<compile_context>
chip_gen: v6e
topology: v6e:2x2x1
jax: 0.10.0
libtpu: 0.0.40
codegen_flags: <defaults>
</compile_context>

<pallas_src>
import functools
import math

import jax
import jax.numpy as jnp
from jax import lax
from jax.experimental import pallas as pl
from jax.experimental.pallas import tpu as pltpu


def _block_kernel(x_ref,
                  ln1g_ref, ln1b_ref,
                  wqkv_ref,                      # (E, 3E)  bf16  [Wq | Wk | Wv]
                  wo_ref, bo_ref,                # (E, E) bf16, (1, E) f32
                  ln2g_ref, ln2b_ref,
                  w1_ref, b1_ref,                # (E, 4E) bf16, (1, 4E) f32
                  w2_ref, b2_ref,                # (4E, E) bf16, (1, E) f32
                  o_ref,
                  *, num_heads, head_dim):
    x = x_ref[0]                                  # (T, E) f32
    T, E = x.shape
    H = num_heads
    Dh = head_dim
    eps = 1e-5

    def layernorm(v, g, b):
        mu = jnp.mean(v, axis=-1, keepdims=True)
        c = v - mu
        var = jnp.mean(c * c, axis=-1, keepdims=True)
        return c * lax.rsqrt(var + eps) * g + b

    # ---- LN1 (f32 elementwise; v5e has no bf16 VPU/EUP) ----
    lx = layernorm(x, ln1g_ref[0], ln1b_ref[0])   # (T, E) f32

    # ---- fused QKV projection: ONE full-width 2D MXU matmul (T,E)@(E,3E) ----
    qkv = jnp.dot(lx.astype(jnp.bfloat16), wqkv_ref[...],
                  preferred_element_type=jnp.float32)            # (T, 3E) f32

    # Fold 1/sqrt(Dh) into q in f32, before the bf16 cast.
    scale = jnp.float32(1.0 / math.sqrt(float(Dh)))
    q = (qkv[:, :E] * scale).astype(jnp.bfloat16)                # (T, E)
    k = qkv[:, E:2 * E].astype(jnp.bfloat16)
    v = qkv[:, 2 * E:].astype(jnp.bfloat16)

    # Per-head views only for the attention einsums: leading-axis stack of
    # static lane slices (known-good Mosaic lowering; pure layout work).
    def to_heads(m):                              # (T, E) -> (H, T, Dh)
        return jnp.stack([m[:, h * Dh:(h + 1) * Dh] for h in range(H)], axis=0)

    qh, kh, vh = to_heads(q), to_heads(k), to_heads(v)

    # ---- head-batched causal attention (scores inherently per-head) ----
    att = jnp.einsum('htd,hsd->hts', qh, kh,
                     preferred_element_type=jnp.float32)         # (H, T, T) f32

    # Single 2D (T,T) mask, broadcast in the where (no (H,T,T) int32 iotas).
    rows = lax.broadcasted_iota(jnp.int32, (T, T), 0)
    cols = lax.broadcasted_iota(jnp.int32, (T, T), 1)
    att = jnp.where((cols > rows)[None, :, :], jnp.float32(-1e30), att)

    att = att - jnp.max(att, axis=-1, keepdims=True)
    p = jnp.exp(att)
    # EUP reciprocal (~1e-3 relative); switch to approx=False if tolerances tighten.
    p = p * pl.reciprocal(jnp.sum(p, axis=-1, keepdims=True), approx=True)

    head_out = jnp.einsum('hts,hsd->htd', p.astype(jnp.bfloat16), vh,
                          preferred_element_type=jnp.float32)    # (H, T, Dh) f32

    # ---- output projection as ONE (T,E)@(E,E) matmul + residual ----
    # Lane-axis merge of heads; the per-head sum now lives inside the MXU
    # f32 accumulation over the full-E contraction.
    ho = jnp.concatenate([head_out[h] for h in range(H)], axis=-1)   # (T, E) f32
    x1 = jnp.dot(ho.astype(jnp.bfloat16), wo_ref[...],
                 preferred_element_type=jnp.float32) + bo_ref[0]
    x = x + x1                                     # dp1 is identity in eval mode

    # ---- LN2 + feed-forward (bf16 MXU operands, f32 elementwise) + residual ----
    lx2 = layernorm(x, ln2g_ref[0], ln2b_ref[0])
    h1 = jnp.dot(lx2.astype(jnp.bfloat16), w1_ref[...],
                 preferred_element_type=jnp.float32) + b1_ref[0]
    h1 = jnp.maximum(h1, 0.0)                      # ReLU
    x2 = jnp.dot(h1.astype(jnp.bfloat16), w2_ref[...],
                 preferred_element_type=jnp.float32) + b2_ref[0]

    o_ref[0] = x + x2


def pack_params(params):
    """One-time repack of the PyTorch-layout params into the kernel layout.

    Hoisted out of block_forward so the concat + bf16 casts (an HBM read+write
    of every weight) run once, not on every forward call.
    """
    return {
        "ln1_g": params["ln1_g"], "ln1_b": params["ln1_b"],
        "wqkv": jnp.concatenate([params["wq"], params["wk"], params["wv"]],
                                axis=1).astype(jnp.bfloat16),     # (E, 3E)
        "wo": params["wo"].astype(jnp.bfloat16),                  # (E, E)
        "bo": params["bo"],
        "ln2_g": params["ln2_g"], "ln2_b": params["ln2_b"],
        "w1": params["w1"].astype(jnp.bfloat16),                  # (E, 4E)
        "b1": params["b1"],
        "w2": params["w2"].astype(jnp.bfloat16),                  # (4E, E)
        "b2": params["b2"],
    }


def block_forward(x, packed, *, num_heads):
    B, T, E = x.shape
    head_dim = E // num_heads

    def full(shape):
        # Grid-invariant operand: same block every grid step.
        # TODO(synk): single-buffer these when E grows (see header note).
        return pl.BlockSpec(shape, lambda b, n=len(shape): (0,) * n)

    kernel = functools.partial(_block_kernel, num_heads=num_heads, head_dim=head_dim)

    return pl.pallas_call(
        kernel,
        out_shape=jax.ShapeDtypeStruct((B, T, E), jnp.float32),
        grid_spec=pltpu.PrefetchScalarGridSpec(
            num_scalar_prefetch=0,
            grid=(B,),                               # B>=2 keeps both v7x TCs fed
            in_specs=[
                pl.BlockSpec((1, T, E), lambda b: (b, 0, 0)),    # x
                full((1, E)), full((1, E)),                      # ln1 gamma/beta
                full((E, 3 * E)),                                # fused [Wq|Wk|Wv]
                full((E, E)), full((1, E)),                      # proj W, b
                full((1, E)), full((1, E)),                      # ln2 gamma/beta
                full((E, 4 * E)), full((1, 4 * E)),              # ff1 W, b
                full((4 * E, E)), full((1, E)),                  # ff2 W, b
            ],
            out_specs=pl.BlockSpec((1, T, E), lambda b: (b, 0, 0)),
        ),
        compiler_params=pltpu.CompilerParams(
            dimension_semantics=("parallel",),
            # 48 MiB keeps ~16 MiB headroom under v7x's 64 MiB/TC VMEM; on
            # v5e/v6e (128 MiB) raise toward ~100 MiB when scaling shapes.
            vmem_limit_bytes=48 * 1024 * 1024),
    )(x,
      packed["ln1_g"], packed["ln1_b"],
      packed["wqkv"],
      packed["wo"], packed["bo"],
      packed["ln2_g"], packed["ln2_b"],
      packed["w1"], packed["b1"],
      packed["w2"], packed["b2"])


def block_reference(x, params, *, num_heads):
    """Pure-JAX f32 reference mirroring the PyTorch Block (eval mode)."""
    E = x.shape[-1]
    head_dim = E // num_heads
    eps = 1e-5

    def ln(v, g, b):
        mu = jnp.mean(v, axis=-1, keepdims=True)
        var = jnp.mean((v - mu) ** 2, axis=-1, keepdims=True)
        return (v - mu) / jnp.sqrt(var + eps) * g[0] + b[0]

    lx = ln(x, params["ln1_g"], params["ln1_b"])
    q = lx @ params["wq"]
    k = lx @ params["wk"]
    v = lx @ params["wv"]
    T = x.shape[1]
    mask = jnp.where(jnp.arange(T)[None, :] > jnp.arange(T)[:, None], -jnp.inf, 0.0)
    outs = []
    for h in range(num_heads):
        lo = h * head_dim
        qh, kh, vh = q[..., lo:lo + head_dim], k[..., lo:lo + head_dim], v[..., lo:lo + head_dim]
        att = jnp.einsum("btd,bsd->bts", qh, kh) / math.sqrt(head_dim) + mask
        att = jax.nn.softmax(att, axis=-1)
        outs.append(jnp.einsum("bts,bsd->btd", att, vh))
    x1 = jnp.concatenate(outs, axis=-1) @ params["wo"] + params["bo"][0]
    x = x + x1
    lx2 = ln(x, params["ln2_g"], params["ln2_b"])
    h1 = jnp.maximum(lx2 @ params["w1"] + params["b1"][0], 0.0)
    x2 = h1 @ params["w2"] + params["b2"][0]
    return x + x2


def init_params(key, embedding_size):
    E = embedding_size
    ks = jax.random.split(key, 8)
    s = 0.02
    return {
        "ln1_g": jnp.ones((1, E), jnp.float32),
        "ln1_b": jnp.zeros((1, E), jnp.float32),
        "wq": s * jax.random.normal(ks[0], (E, E), jnp.float32),
        "wk": s * jax.random.normal(ks[1], (E, E), jnp.float32),
        "wv": s * jax.random.normal(ks[2], (E, E), jnp.float32),
        "wo": s * jax.random.normal(ks[3], (E, E), jnp.float32),
        "bo": s * jax.random.normal(ks[4], (1, E), jnp.float32),
        "ln2_g": jnp.ones((1, E), jnp.float32),
        "ln2_b": jnp.zeros((1, E), jnp.float32),
        "w1": s * jax.random.normal(ks[5], (E, 4 * E), jnp.float32),
        "b1": jnp.zeros((1, 4 * E), jnp.float32),
        "w2": s * jax.random.normal(ks[6], (4 * E, E), jnp.float32),
        "b2": jnp.zeros((1, E), jnp.float32),
    }


if __name__ == "__main__":
    # Small shapes consistent with the module: batch=2, context=8, embedding=32, 4 heads.
    B, T, E, H = 2, 8, 32, 4
    key = jax.random.PRNGKey(0)
    kx, kp = jax.random.split(key)
    x = jax.random.normal(kx, (B, T, E), jnp.float32)
    params = init_params(kp, E)

    # One-time weight repack (hoisted out of the forward path).
    packed = jax.block_until_ready(pack_params(params))

    out = block_forward(x, packed, num_heads=H)
    out = jax.block_until_ready(out)

    ref = block_reference(x, params, num_heads=H)
    assert out.shape == (B, T, E)
    # bf16 MXU operands (f32 accumulation) => loosened tolerance vs f32 reference.
    assert jnp.allclose(out, ref, atol=2e-2, rtol=2e-2), "Pallas kernel mismatch vs reference"

    print("KERNEL_OK")
</pallas_src>

<mosaic_0001>
module attributes {stable_mosaic.version = 11 : i64} {
  func.func @_block_kernel(%arg0: i32, %arg1: memref<1x8x32xf32, #tpu.memory_space<vmem>>, %arg2: memref<1x32xf32, #tpu.memory_space<vmem>>, %arg3: memref<1x32xf32, #tpu.memory_space<vmem>>, %arg4: memref<32x96xbf16, #tpu.memory_space<vmem>>, %arg5: memref<32x32xbf16, #tpu.memory_space<vmem>>, %arg6: memref<1x32xf32, #tpu.memory_space<vmem>>, %arg7: memref<1x32xf32, #tpu.memory_space<vmem>>, %arg8: memref<1x32xf32, #tpu.memory_space<vmem>>, %arg9: memref<32x128xbf16, #tpu.memory_space<vmem>>, %arg10: memref<1x128xf32, #tpu.memory_space<vmem>>, %arg11: memref<128x32xbf16, #tpu.memory_space<vmem>>, %arg12: memref<1x32xf32, #tpu.memory_space<vmem>>, %arg13: memref<1x8x32xf32, #tpu.memory_space<vmem>>) attributes {dimension_semantics = [#tpu.dimension_semantics<parallel>], iteration_bounds = array<i64: 2>, scalar_prefetch = 0 : i64, scratch_operands = 0 : i64, tpu.core_type = #tpu.core_type<tc>, window_params = [{transform_indices = @transform_0, window_bounds = array<i64: 1, 8, 32>}, {pipeline_mode = #tpu.pipeline_mode<synchronous>, transform_indices = @transform_1, window_bounds = array<i64: 1, 32>}, {pipeline_mode = #tpu.pipeline_mode<synchronous>, transform_indices = @transform_2, window_bounds = array<i64: 1, 32>}, {pipeline_mode = #tpu.pipeline_mode<synchronous>, transform_indices = @transform_3, window_bounds = array<i64: 32, 96>}, {pipeline_mode = #tpu.pipeline_mode<synchronous>, transform_indices = @transform_4, window_bounds = array<i64: 32, 32>}, {pipeline_mode = #tpu.pipeline_mode<synchronous>, transform_indices = @transform_5, window_bounds = array<i64: 1, 32>}, {pipeline_mode = #tpu.pipeline_mode<synchronous>, transform_indices = @transform_6, window_bounds = array<i64: 1, 32>}, {pipeline_mode = #tpu.pipeline_mode<synchronous>, transform_indices = @transform_7, window_bounds = array<i64: 1, 32>}, {pipeline_mode = #tpu.pipeline_mode<synchronous>, transform_indices = @transform_8, window_bounds = array<i64: 32, 128>}, {pipeline_mode = #tpu.pipeline_mode<synchronous>, transform_indices = @transform_9, window_bounds = array<i64: 1, 128>}, {pipeline_mode = #tpu.pipeline_mode<synchronous>, transform_indices = @transform_10, window_bounds = array<i64: 128, 32>}, {pipeline_mode = #tpu.pipeline_mode<synchronous>, transform_indices = @transform_11, window_bounds = array<i64: 1, 32>}, {transform_indices = @transform_12, window_bounds = array<i64: 1, 8, 32>}]} {
    %c0 = arith.constant 0 : index
    %c0_0 = arith.constant 0 : index
    %c0_1 = arith.constant 0 : index
    %0 = vector.load %arg1[%c0, %c0_0, %c0_1] : memref<1x8x32xf32, #tpu.memory_space<vmem>>, vector<1x8x32xf32>
    %1 = vector.shape_cast %0 : vector<1x8x32xf32> to vector<8x32xf32>
    %c0_2 = arith.constant 0 : index
    %c0_3 = arith.constant 0 : index
    %2 = vector.load %arg2[%c0_2, %c0_3] : memref<1x32xf32, #tpu.memory_space<vmem>>, vector<1x32xf32>
    %3 = vector.shape_cast %2 : vector<1x32xf32> to vector<32xf32>
    %c0_4 = arith.constant 0 : index
    %c0_5 = arith.constant 0 : index
    %4 = vector.load %arg3[%c0_4, %c0_5] : memref<1x32xf32, #tpu.memory_space<vmem>>, vector<1x32xf32>
    %5 = vector.shape_cast %4 : vector<1x32xf32> to vector<32xf32>
    %cst = arith.constant dense<0.000000e+00> : vector<8xf32>
    %6 = vector.multi_reduction <add>, %1, %cst [1] : vector<8x32xf32> to vector<8xf32>
    %7 = vector.shape_cast %6 : vector<8xf32> to vector<8x1xf32>
    %cst_6 = arith.constant 3.200000e+01 : f32
    %8 = vector.broadcast %cst_6 : f32 to vector<8x1xf32>
    %9 = arith.divf %7, %8 : vector<8x1xf32>
    %10 = vector.broadcast %9 : vector<8x1xf32> to vector<8x32xf32>
    %11 = arith.subf %1, %10 : vector<8x32xf32>
    %12 = arith.mulf %11, %11 : vector<8x32xf32>
    %cst_7 = arith.constant dense<0.000000e+00> : vector<8xf32>
    %13 = vector.multi_reduction <add>, %12, %cst_7 [1] : vector<8x32xf32> to vector<8xf32>
    %14 = vector.shape_cast %13 : vector<8xf32> to vector<8x1xf32>
    %cst_8 = arith.constant 3.200000e+01 : f32
    %15 = vector.broadcast %cst_8 : f32 to vector<8x1xf32>
    %16 = arith.divf %14, %15 : vector<8x1xf32>
    %cst_9 = arith.constant 9.99999974E-6 : f32
    %17 = vector.broadcast %cst_9 : f32 to vector<8x1xf32>
    %18 = arith.addf %16, %17 : vector<8x1xf32>
    %19 = math.rsqrt %18 : vector<8x1xf32>
    %20 = vector.broadcast %19 : vector<8x1xf32> to vector<8x32xf32>
    %21 = arith.mulf %11, %20 : vector<8x32xf32>
    %22 = vector.shape_cast %3 : vector<32xf32> to vector<1x32xf32>
    %23 = vector.broadcast %22 : vector<1x32xf32> to vector<8x32xf32>
    %24 = arith.mulf %21, %23 : vector<8x32xf32>
    %25 = vector.shape_cast %5 : vector<32xf32> to vector<1x32xf32>
    %26 = vector.broadcast %25 : vector<1x32xf32> to vector<8x32xf32>
    %27 = arith.addf %24, %26 : vector<8x32xf32>
    %28 = arith.truncf %27 : vector<8x32xf32> to vector<8x32xbf16>
    %c0_10 = arith.constant 0 : index
    %c0_11 = arith.constant 0 : index
    %29 = vector.load %arg4[%c0_10, %c0_11] : memref<32x96xbf16, #tpu.memory_space<vmem>>, vector<32x96xbf16>
    %cst_12 = arith.constant dense<0.000000e+00> : vector<8x96xf32>
    %30 = tpu.matmul %28, %29, %cst_12 {dimension_numbers = #tpu.dot_dimension_numbers<[1], [0], [0], [1], [0, 0, 1, 1], [], []>} : vector<8x32xbf16>, vector<32x96xbf16>, vector<8x96xf32> -> vector<8x96xf32>
    %31 = vector.extract_strided_slice %30 {offsets = [0, 0], sizes = [8, 32], strides = [1, 1]} : vector<8x96xf32> to vector<8x32xf32>
    %cst_13 = arith.constant 0.353553385 : f32
    %32 = vector.broadcast %cst_13 : f32 to vector<8x32xf32>
    %33 = arith.mulf %31, %32 : vector<8x32xf32>
    %34 = arith.truncf %33 : vector<8x32xf32> to vector<8x32xbf16>
    %35 = vector.extract_strided_slice %30 {offsets = [0, 32], sizes = [8, 32], strides = [1, 1]} : vector<8x96xf32> to vector<8x32xf32>
    %36 = arith.truncf %35 : vector<8x32xf32> to vector<8x32xbf16>
    %37 = vector.extract_strided_slice %30 {offsets = [0, 64], sizes = [8, 32], strides = [1, 1]} : vector<8x96xf32> to vector<8x32xf32>
    %38 = arith.truncf %37 : vector<8x32xf32> to vector<8x32xbf16>
    %39 = vector.extract_strided_slice %34 {offsets = [0, 0], sizes = [8, 8], strides = [1, 1]} : vector<8x32xbf16> to vector<8x8xbf16>
    %40 = vector.extract_strided_slice %34 {offsets = [0, 8], sizes = [8, 8], strides = [1, 1]} : vector<8x32xbf16> to vector<8x8xbf16>
    %41 = vector.extract_strided_slice %34 {offsets = [0, 16], sizes = [8, 8], strides = [1, 1]} : vector<8x32xbf16> to vector<8x8xbf16>
    %42 = vector.extract_strided_slice %34 {offsets = [0, 24], sizes = [8, 8], strides = [1, 1]} : vector<8x32xbf16> to vector<8x8xbf16>
    %43 = vector.shape_cast %39 : vector<8x8xbf16> to vector<1x8x8xbf16>
    %44 = vector.shape_cast %40 : vector<8x8xbf16> to vector<1x8x8xbf16>
    %45 = vector.shape_cast %41 : vector<8x8xbf16> to vector<1x8x8xbf16>
    %46 = vector.shape_cast %42 : vector<8x8xbf16> to vector<1x8x8xbf16>
    %47 = tpu.concatenate %43, %44, %45, %46 in 0 : vector<1x8x8xbf16>, vector<1x8x8xbf16>, vector<1x8x8xbf16>, vector<1x8x8xbf16> -> vector<4x8x8xbf16>
    %48 = vector.extract_strided_slice %36 {offsets = [0, 0], sizes = [8, 8], strides = [1, 1]} : vector<8x32xbf16> to vector<8x8xbf16>
    %49 = vector.extract_strided_slice %36 {offsets = [0, 8], sizes = [8, 8], strides = [1, 1]} : vector<8x32xbf16> to vector<8x8xbf16>
    %50 = vector.extract_strided_slice %36 {offsets = [0, 16], sizes = [8, 8], strides = [1, 1]} : vector<8x32xbf16> to vector<8x8xbf16>
    %51 = vector.extract_strided_slice %36 {offsets = [0, 24], sizes = [8, 8], strides = [1, 1]} : vector<8x32xbf16> to vector<8x8xbf16>
    %52 = vector.shape_cast %48 : vector<8x8xbf16> to vector<1x8x8xbf16>
    %53 = vector.shape_cast %49 : vector<8x8xbf16> to vector<1x8x8xbf16>
    %54 = vector.shape_cast %50 : vector<8x8xbf16> to vector<1x8x8xbf16>
    %55 = vector.shape_cast %51 : vector<8x8xbf16> to vector<1x8x8xbf16>
    %56 = tpu.concatenate %52, %53, %54, %55 in 0 : vector<1x8x8xbf16>, vector<1x8x8xbf16>, vector<1x8x8xbf16>, vector<1x8x8xbf16> -> vector<4x8x8xbf16>
    %57 = vector.extract_strided_slice %38 {offsets = [0, 0], sizes = [8, 8], strides = [1, 1]} : vector<8x32xbf16> to vector<8x8xbf16>
    %58 = vector.extract_strided_slice %38 {offsets = [0, 8], sizes = [8, 8], strides = [1, 1]} : vector<8x32xbf16> to vector<8x8xbf16>
    %59 = vector.extract_strided_slice %38 {offsets = [0, 16], sizes = [8, 8], strides = [1, 1]} : vector<8x32xbf16> to vector<8x8xbf16>
    %60 = vector.extract_strided_slice %38 {offsets = [0, 24], sizes = [8, 8], strides = [1, 1]} : vector<8x32xbf16> to vector<8x8xbf16>
    %61 = vector.shape_cast %57 : vector<8x8xbf16> to vector<1x8x8xbf16>
    %62 = vector.shape_cast %58 : vector<8x8xbf16> to vector<1x8x8xbf16>
    %63 = vector.shape_cast %59 : vector<8x8xbf16> to vector<1x8x8xbf16>
    %64 = vector.shape_cast %60 : vector<8x8xbf16> to vector<1x8x8xbf16>
    %65 = tpu.concatenate %61, %62, %63, %64 in 0 : vector<1x8x8xbf16>, vector<1x8x8xbf16>, vector<1x8x8xbf16>, vector<1x8x8xbf16> -> vector<4x8x8xbf16>
    "tpu.trace_start"() <{level = 10 : i32, message = "htd,hsd->hts"}> : () -> ()
    %cst_14 = arith.constant dense<0.000000e+00> : vector<4x8x8xf32>
    %66 = tpu.matmul %47, %56, %cst_14 {dimension_numbers = #tpu.dot_dimension_numbers<[2], [2], [1], [1], [0, 0, 0, 1, 1, 1], [0], [0]>} : vector<4x8x8xbf16>, vector<4x8x8xbf16>, vector<4x8x8xf32> -> vector<4x8x8xf32>
    "tpu.trace_stop"() : () -> ()
    %67 = tpu.iota {dimensions = array<i32: 0>} : vector<8x8xi32>
    %68 = tpu.iota {dimensions = array<i32: 1>} : vector<8x8xi32>
    %69 = arith.cmpi sgt, %68, %67 : vector<8x8xi32>
    %70 = vector.shape_cast %69 : vector<8x8xi1> to vector<1x8x8xi1>
    %cst_15 = arith.constant -1.000000e+30 : f32
    %71 = vector.shape_cast %70 : vector<1x8x8xi1> to vector<1x8x8xi1>
    %72 = vector.broadcast %71 : vector<1x8x8xi1> to vector<4x8x8xi1>
    %73 = vector.broadcast %cst_15 : f32 to vector<4x8x8xf32>
    %74 = arith.select %72, %73, %66 : vector<4x8x8xi1>, vector<4x8x8xf32>
    %cst_16 = arith.constant dense<0xFF800000> : vector<4x8xf32>
    %75 = vector.multi_reduction <maximumf>, %74, %cst_16 [2] : vector<4x8x8xf32> to vector<4x8xf32>
    %76 = vector.shape_cast %75 : vector<4x8xf32> to vector<4x8x1xf32>
    %77 = vector.broadcast %76 : vector<4x8x1xf32> to vector<4x8x8xf32>
    %78 = arith.subf %74, %77 : vector<4x8x8xf32>
    %79 = math.exp %78 : vector<4x8x8xf32>
    %cst_17 = arith.constant dense<0.000000e+00> : vector<4x8xf32>
    %80 = vector.multi_reduction <add>, %79, %cst_17 [2] : vector<4x8x8xf32> to vector<4x8xf32>
    %81 = vector.shape_cast %80 : vector<4x8xf32> to vector<4x8x1xf32>
    %82 = tpu.reciprocal %81 {approx = true} : vector<4x8x1xf32> -> vector<4x8x1xf32>
    %83 = vector.broadcast %82 : vector<4x8x1xf32> to vector<4x8x8xf32>
    %84 = arith.mulf %79, %83 : vector<4x8x8xf32>
    %85 = arith.truncf %84 : vector<4x8x8xf32> to vector<4x8x8xbf16>
    "tpu.trace_start"() <{level = 10 : i32, message = "hts,hsd->htd"}> : () -> ()
    %cst_18 = arith.constant dense<0.000000e+00> : vector<4x8x8xf32>
    %86 = tpu.matmul %85, %65, %cst_18 {dimension_numbers = #tpu.dot_dimension_numbers<[2], [1], [1], [2], [0, 0, 0, 1, 1, 2], [0], [0]>} : vector<4x8x8xbf16>, vector<4x8x8xbf16>, vector<4x8x8xf32> -> vector<4x8x8xf32>
    "tpu.trace_stop"() : () -> ()
    %87 = vector.extract_strided_slice %86 {offsets = [0, 0, 0], sizes = [1, 8, 8], strides = [1, 1, 1]} : vector<4x8x8xf32> to vector<1x8x8xf32>
    %88 = vector.shape_cast %87 : vector<1x8x8xf32> to vector<8x8xf32>
    %89 = vector.extract_strided_slice %86 {offsets = [1, 0, 0], sizes = [1, 8, 8], strides = [1, 1, 1]} : vector<4x8x8xf32> to vector<1x8x8xf32>
    %90 = vector.shape_cast %89 : vector<1x8x8xf32> to vector<8x8xf32>
    %91 = vector.extract_strided_slice %86 {offsets = [2, 0, 0], sizes = [1, 8, 8], strides = [1, 1, 1]} : vector<4x8x8xf32> to vector<1x8x8xf32>
    %92 = vector.shape_cast %91 : vector<1x8x8xf32> to vector<8x8xf32>
    %93 = vector.extract_strided_slice %86 {offsets = [3, 0, 0], sizes = [1, 8, 8], strides = [1, 1, 1]} : vector<4x8x8xf32> to vector<1x8x8xf32>
    %94 = vector.shape_cast %93 : vector<1x8x8xf32> to vector<8x8xf32>
    %95 = tpu.concatenate %88, %90, %92, %94 in 1 : vector<8x8xf32>, vector<8x8xf32>, vector<8x8xf32>, vector<8x8xf32> -> vector<8x32xf32>
    %96 = arith.truncf %95 : vector<8x32xf32> to vector<8x32xbf16>
    %c0_19 = arith.constant 0 : index
    %c0_20 = arith.constant 0 : index
    %97 = vector.load %arg5[%c0_19, %c0_20] : memref<32x32xbf16, #tpu.memory_space<vmem>>, vector<32x32xbf16>
    %cst_21 = arith.constant dense<0.000000e+00> : vector<8x32xf32>
    %98 = tpu.matmul %96, %97, %cst_21 {dimension_numbers = #tpu.dot_dimension_numbers<[1], [0], [0], [1], [0, 0, 1, 1], [], []>} : vector<8x32xbf16>, vector<32x32xbf16>, vector<8x32xf32> -> vector<8x32xf32>
    %c0_22 = arith.constant 0 : index
    %c0_23 = arith.constant 0 : index
    %99 = vector.load %arg6[%c0_22, %c0_23] : memref<1x32xf32, #tpu.memory_space<vmem>>, vector<1x32xf32>
    %100 = vector.shape_cast %99 : vector<1x32xf32> to vector<32xf32>
    %101 = vector.shape_cast %100 : vector<32xf32> to vector<1x32xf32>
    %102 = vector.broadcast %101 : vector<1x32xf32> to vector<8x32xf32>
    %103 = arith.addf %98, %102 : vector<8x32xf32>
    %104 = arith.addf %1, %103 : vector<8x32xf32>
    %c0_24 = arith.constant 0 : index
    %c0_25 = arith.constant 0 : index
    %105 = vector.load %arg7[%c0_24, %c0_25] : memref<1x32xf32, #tpu.memory_space<vmem>>, vector<1x32xf32>
    %106 = vector.shape_cast %105 : vector<1x32xf32> to vector<32xf32>
    %c0_26 = arith.constant 0 : index
    %c0_27 = arith.constant 0 : index
    %107 = vector.load %arg8[%c0_26, %c0_27] : memref<1x32xf32, #tpu.memory_space<vmem>>, vector<1x32xf32>
    %108 = vector.shape_cast %107 : vector<1x32xf32> to vector<32xf32>
    %cst_28 = arith.constant dense<0.000000e+00> : vector<8xf32>
    %109 = vector.multi_reduction <add>, %104, %cst_28 [1] : vector<8x32xf32> to vector<8xf32>
    %110 = vector.shape_cast %109 : vector<8xf32> to vector<8x1xf32>
    %cst_29 = arith.constant 3.200000e+01 : f32
    %111 = vector.broadcast %cst_29 : f32 to vector<8x1xf32>
    %112 = arith.divf %110, %111 : vector<8x1xf32>
    %113 = vector.broadcast %112 : vector<8x1xf32> to vector<8x32xf32>
    %114 = arith.subf %104, %113 : vector<8x32xf32>
    %115 = arith.mulf %114, %114 : vector<8x32xf32>
    %cst_30 = arith.constant dense<0.000000e+00> : vector<8xf32>
    %116 = vector.multi_reduction <add>, %115, %cst_30 [1] : vector<8x32xf32> to vector<8xf32>
    %117 = vector.shape_cast %116 : vector<8xf32> to vector<8x1xf32>
    %cst_31 = arith.constant 3.200000e+01 : f32
    %118 = vector.broadcast %cst_31 : f32 to vector<8x1xf32>
    %119 = arith.divf %117, %118 : vector<8x1xf32>
    %cst_32 = arith.constant 9.99999974E-6 : f32
    %120 = vector.broadcast %cst_32 : f32 to vector<8x1xf32>
    %121 = arith.addf %119, %120 : vector<8x1xf32>
    %122 = math.rsqrt %121 : vector<8x1xf32>
    %123 = vector.broadcast %122 : vector<8x1xf32> to vector<8x32xf32>
    %124 = arith.mulf %114, %123 : vector<8x32xf32>
    %125 = vector.shape_cast %106 : vector<32xf32> to vector<1x32xf32>
    %126 = vector.broadcast %125 : vector<1x32xf32> to vector<8x32xf32>
    %127 = arith.mulf %124, %126 : vector<8x32xf32>
    %128 = vector.shape_cast %108 : vector<32xf32> to vector<1x32xf32>
    %129 = vector.broadcast %128 : vector<1x32xf32> to vector<8x32xf32>
    %130 = arith.addf %127, %129 : vector<8x32xf32>
    %131 = arith.truncf %130 : vector<8x32xf32> to vector<8x32xbf16>
    %c0_33 = arith.constant 0 : index
    %c0_34 = arith.constant 0 : index
    %132 = vector.load %arg9[%c0_33, %c0_34] : memref<32x128xbf16, #tpu.memory_space<vmem>>, vector<32x128xbf16>
    %cst_35 = arith.constant dense<0.000000e+00> : vector<8x128xf32>
    %133 = tpu.matmul %131, %132, %cst_35 {dimension_numbers = #tpu.dot_dimension_numbers<[1], [0], [0], [1], [0, 0, 1, 1], [], []>} : vector<8x32xbf16>, vector<32x128xbf16>, vector<8x128xf32> -> vector<8x128xf32>
    %c0_36 = arith.constant 0 : index
    %c0_37 = arith.constant 0 : index
    %134 = vector.load %arg10[%c0_36, %c0_37] : memref<1x128xf32, #tpu.memory_space<vmem>>, vector<1x128xf32>
    %135 = vector.shape_cast %134 : vector<1x128xf32> to vector<128xf32>
    %136 = vector.shape_cast %135 : vector<128xf32> to vector<1x128xf32>
    %137 = vector.broadcast %136 : vector<1x128xf32> to vector<8x128xf32>
    %138 = arith.addf %133, %137 : vector<8x128xf32>
    %cst_38 = arith.constant 0.000000e+00 : f32
    %139 = vector.broadcast %cst_38 : f32 to vector<8x128xf32>
    %140 = arith.maximumf %138, %139 : vector<8x128xf32>
    %141 = arith.truncf %140 : vector<8x128xf32> to vector<8x128xbf16>
    %c0_39 = arith.constant 0 : index
    %c0_40 = arith.constant 0 : index
    %142 = vector.load %arg11[%c0_39, %c0_40] : memref<128x32xbf16, #tpu.memory_space<vmem>>, vector<128x32xbf16>
    %cst_41 = arith.constant dense<0.000000e+00> : vector<8x32xf32>
    %143 = tpu.matmul %141, %142, %cst_41 {dimension_numbers = #tpu.dot_dimension_numbers<[1], [0], [0], [1], [0, 0, 1, 1], [], []>} : vector<8x128xbf16>, vector<128x32xbf16>, vector<8x32xf32> -> vector<8x32xf32>
    %c0_42 = arith.constant 0 : index
    %c0_43 = arith.constant 0 : index
    %144 = vector.load %arg12[%c0_42, %c0_43] : memref<1x32xf32, #tpu.memory_space<vmem>>, vector<1x32xf32>
    %145 = vector.shape_cast %144 : vector<1x32xf32> to vector<32xf32>
    %146 = vector.shape_cast %145 : vector<32xf32> to vector<1x32xf32>
    %147 = vector.broadcast %146 : vector<1x32xf32> to vector<8x32xf32>
    %148 = arith.addf %143, %147 : vector<8x32xf32>
    %149 = arith.addf %104, %148 : vector<8x32xf32>
    %c0_44 = arith.constant 0 : index
    %c0_45 = arith.constant 0 : index
    %c0_46 = arith.constant 0 : index
    %150 = vector.load %arg13[%c0_44, %c0_45, %c0_46] : memref<1x8x32xf32, #tpu.memory_space<vmem>>, vector<1x8x32xf32>
    %151 = vector.shape_cast %150 : vector<1x8x32xf32> to vector<8x32xf32>
    %152 = vector.shape_cast %149 : vector<8x32xf32> to vector<1x8x32xf32>
    tpu.vector_store %arg13[%c0_44, %c0_45, %c0_46], %152 {strides = array<i32>} : memref<1x8x32xf32, #tpu.memory_space<vmem>>, vector<1x8x32xf32>,
    return
  }
  func.func @transform_0(%arg0: i32) -> (i32, i32, i32) {
    %c0_i32 = arith.constant 0 : i32
    %c0_i32_0 = arith.constant 0 : i32
    %c0_i32_1 = arith.constant 0 : i32
    return %arg0, %c0_i32, %c0_i32_0 : i32, i32, i32
  }
  func.func @transform_1(%arg0: i32) -> (i32, i32) {
    %c0_i32 = arith.constant 0 : i32
    %c0_i32_0 = arith.constant 0 : i32
    %c0_i32_1 = arith.constant 0 : i32
    return %c0_i32, %c0_i32_0 : i32, i32
  }
  func.func @transform_2(%arg0: i32) -> (i32, i32) {
    %c0_i32 = arith.constant 0 : i32
    %c0_i32_0 = arith.constant 0 : i32
    %c0_i32_1 = arith.constant 0 : i32
    return %c0_i32, %c0_i32_0 : i32, i32
  }
  func.func @transform_3(%arg0: i32) -> (i32, i32) {
    %c0_i32 = arith.constant 0 : i32
    %c0_i32_0 = arith.constant 0 : i32
    %c0_i32_1 = arith.constant 0 : i32
    return %c0_i32, %c0_i32_0 : i32, i32
  }
  func.func @transform_4(%arg0: i32) -> (i32, i32) {
    %c0_i32 = arith.constant 0 : i32
    %c0_i32_0 = arith.constant 0 : i32
    %c0_i32_1 = arith.constant 0 : i32
    return %c0_i32, %c0_i32_0 : i32, i32
  }
  func.func @transform_5(%arg0: i32) -> (i32, i32) {
    %c0_i32 = arith.constant 0 : i32
    %c0_i32_0 = arith.constant 0 : i32
    %c0_i32_1 = arith.constant 0 : i32
    return %c0_i32, %c0_i32_0 : i32, i32
  }
  func.func @transform_6(%arg0: i32) -> (i32, i32) {
    %c0_i32 = arith.constant 0 : i32
    %c0_i32_0 = arith.constant 0 : i32
    %c0_i32_1 = arith.constant 0 : i32
    return %c0_i32, %c0_i32_0 : i32, i32
  }
  func.func @transform_7(%arg0: i32) -> (i32, i32) {
    %c0_i32 = arith.constant 0 : i32
    %c0_i32_0 = arith.constant 0 : i32
    %c0_i32_1 = arith.constant 0 : i32
    return %c0_i32, %c0_i32_0 : i32, i32
  }
  func.func @transform_8(%arg0: i32) -> (i32, i32) {
    %c0_i32 = arith.constant 0 : i32
    %c0_i32_0 = arith.constant 0 : i32
    %c0_i32_1 = arith.constant 0 : i32
    return %c0_i32, %c0_i32_0 : i32, i32
  }
  func.func @transform_9(%arg0: i32) -> (i32, i32) {
    %c0_i32 = arith.constant 0 : i32
    %c0_i32_0 = arith.constant 0 : i32
    %c0_i32_1 = arith.constant 0 : i32
    return %c0_i32, %c0_i32_0 : i32, i32
  }
  func.func @transform_10(%arg0: i32) -> (i32, i32) {
    %c0_i32 = arith.constant 0 : i32
    %c0_i32_0 = arith.constant 0 : i32
    %c0_i32_1 = arith.constant 0 : i32
    return %c0_i32, %c0_i32_0 : i32, i32
  }
  func.func @transform_11(%arg0: i32) -> (i32, i32) {
    %c0_i32 = arith.constant 0 : i32
    %c0_i32_0 = arith.constant 0 : i32
    %c0_i32_1 = arith.constant 0 : i32
    return %c0_i32, %c0_i32_0 : i32, i32
  }
  func.func @transform_12(%arg0: i32) -> (i32, i32, i32) {
    %c0_i32 = arith.constant 0 : i32
    %c0_i32_0 = arith.constant 0 : i32
    %c0_i32_1 = arith.constant 0 : i32
    return %arg0, %c0_i32, %c0_i32_0 : i32, i32, i32
  }
}

</mosaic_0001>

<llo_original>
// kernel: tpu_custom_call.1
$region0: #{tpu_custom_call.1}
  #allocation0 [shape = 'u32[]', space=smem, size = 0x4, offset = 0x4, fixed_abs, tag = 'smem constant byte address 0x4 - core index']
  #allocation1 [shape = 'u32[144,128]{1,0:T(1,128)}', space=vmem, size = 0x12000, scoped, tag = 'internal scratch']
  %s0 = inlined_call_operand.vmem [shape: f32[2,8,32], index: 0, kind: input, shape index: {}]
  %s1 = inlined_call_operand.vmem [shape: f32[1,32], index: 1, kind: input, shape index: {}]
  %s2 = inlined_call_operand.vmem [shape: f32[1,32], index: 2, kind: input, shape index: {}]
  %s3 = inlined_call_operand.vmem [shape: bf16[32,96], index: 3, kind: input, shape index: {}]
  %s4 = inlined_call_operand.vmem [shape: bf16[32,32], index: 4, kind: input, shape index: {}]
  %s5 = inlined_call_operand.vmem [shape: f32[1,32], index: 5, kind: input, shape index: {}]
  %s6 = inlined_call_operand.vmem [shape: f32[1,32], index: 6, kind: input, shape index: {}]
  %s7 = inlined_call_operand.vmem [shape: f32[1,32], index: 7, kind: input, shape index: {}]
  %s8 = inlined_call_operand.vmem [shape: bf16[32,128], index: 8, kind: input, shape index: {}]
  %s9 = inlined_call_operand.vmem [shape: f32[1,128], index: 9, kind: input, shape index: {}]
  %s10 = inlined_call_operand.vmem [shape: bf16[128,32], index: 10, kind: input, shape index: {}]
  %s11 = inlined_call_operand.vmem [shape: f32[1,32], index: 11, kind: input, shape index: {}]
  %s12 = inlined_call_operand.hbm [shape: f32[2,8,32], index: 12, kind: output, shape index: {}]
  %s13 = sld [smem:[#allocation0]]
  $region81: #{tpu_custom_call.1} parent=0
    _
  %s15 = ssub.s32 1, %s13
  %s16 = scalar_select 0, %s15, %s13
  $region1: #{tpu_custom_call.1} parent=0
    #allocation2 [shape = 'u8[8192]{0}', space=vmem, size = 0x2000, scoped, tag = 'output window, operand 0']
    #allocation3 [shape = 's32[2]{0}', space=sflag, size = 0x8, scoped, tag = 'scoped memory for tpu_custom_call.1']
    %17 = vsyncpa [#allocation3], 0
    %s18 = scalar_lea.sflag [#allocation3], 1
    %19 = vsyncpa %s18, 0
    loop: start=0, step=1, limit=4
    $region2: #{tpu_custom_call.1} parent=1 // loop_pre_header
      _
    $region3: #{tpu_custom_call.1} parent=1 // loop_header
      %s21 = sphi 0, %s25
      %p22 = scmp.ge.s32.totalorder %s21, 4
      %s31 = sphi 0, %s33
      %s34 = sphi 0, %s31
      %s35 = sphi 0, %s34
      %s51 = sphi 0, %s35
      %s55 = sphi 0, %s55
      %s57 = sphi 0, %s55
      %s58 = sphi 0, %s57
      %s72 = sphi 0, %s58
      %s76 = sphi 0, %s76
      %s78 = sphi 0, %s76
      %s79 = sphi 0, %s78
      %s93 = sphi 0, %s79
      %s97 = sphi 0, %s97
      %s99 = sphi 0, %s97
      %s100 = sphi 0, %s99
      %s114 = sphi 0, %s100
      %s118 = sphi 0, %s118
      %s120 = sphi 0, %s118
      %s121 = sphi 0, %s120
      %s135 = sphi 0, %s121
      %s139 = sphi 0, %s139
      %s141 = sphi 0, %s139
      %s142 = sphi 0, %s141
      %s156 = sphi 0, %s142
      %s160 = sphi 0, %s160
      %s162 = sphi 0, %s160
      %s163 = sphi 0, %s162
      %s177 = sphi 0, %s163
      %s181 = sphi 0, %s181
      %s183 = sphi 0, %s181
      %s184 = sphi 0, %s183
      %s198 = sphi 0, %s184
      %s202 = sphi 0, %s202
      %s204 = sphi 0, %s202
      %s205 = sphi 0, %s204
      %s219 = sphi 0, %s205
      %s223 = sphi 0, %s223
      %s225 = sphi 0, %s223
      %s226 = sphi 0, %s225
      %s240 = sphi 0, %s226
      %s244 = sphi 0, %s244
      %s246 = sphi 0, %s244
      %s247 = sphi 0, %s246
      %s261 = sphi 0, %s247
      %s265 = sphi 0, %s265
      %s267 = sphi 0, %s265
      %s268 = sphi 0, %s267
      %s282 = sphi 0, %s268
      %s288 = sphi 0, %s290
      %s291 = sphi 0, %s288
      %s292 = sphi 0, %s291
      %s308 = sphi 0, %s292
    $region4: #{tpu_custom_call.1} parent=1 // loop_header_branch
      %24 = sbr.rel (%p22) target = $region8
    $region5: #{tpu_custom_call.1} parent=1 // loop_body
      %s26 = ssub.s32 %s21, 1
      %s27 = ssub.s32 %s21, 2
      %s28 = sadd.s32 %s21, 1
      %s29 = ssub.s32 %s21, %s28
      %p30 = scmp.eq.s32.totalorder %s29, 0
      %s32 = sadd.s32 %s31, 1
      %s33 = scalar_select %p30, %s31, %s32
      %p36 = pneg %p30
      %p37 = scmp.eq.s32.totalorder %s21, 1
      %p38 = por %p36, %p37
      %p39 = scmp.ne.s32.totalorder %s31, %s34
      %p40 = scmp.eq.s32.totalorder %s21, 0
      %p41 = por %p39, %p40
      %p42 = scmp.ne.s32.totalorder %s31, %s34
      %p43 = scmp.eq.s32.totalorder %s26, 1
      %p44 = por %p42, %p43
      %p45 = scmp.ne.s32.totalorder %s34, %s35
      %p46 = scmp.eq.s32.totalorder %s26, 0
      %p47 = por %p45, %p46
      %p48 = scmp.ne.s32.totalorder %s34, %s35
      %p49 = scmp.eq.s32.totalorder %s27, 1
      %p50 = por %p48, %p49
      %p52 = scmp.ne.s32.totalorder %s35, %s51
      %p53 = scmp.eq.s32.totalorder %s27, 0
      %p54 = por %p52, %p53
      %s56 = sadd.s32 %s55, 1
      %p59 = scmp.eq.s32.totalorder %s21, 1
      %p60 = scmp.ne.s32.totalorder %s55, %s57
      %p61 = scmp.eq.s32.totalorder %s21, 0
      %p62 = por %p60, %p61
      %p63 = scmp.ne.s32.totalorder %s55, %s57
      %p64 = scmp.eq.s32.totalorder %s26, 1
      %p65 = por %p63, %p64
      %p66 = scmp.ne.s32.totalorder %s57, %s58
      %p67 = scmp.eq.s32.totalorder %s26, 0
      %p68 = por %p66, %p67
      %p69 = scmp.ne.s32.totalorder %s57, %s58
      %p70 = scmp.eq.s32.totalorder %s27, 1
      %p71 = por %p69, %p70
      %p73 = scmp.ne.s32.totalorder %s58, %s72
      %p74 = scmp.eq.s32.totalorder %s27, 0
      %p75 = por %p73, %p74
      %s77 = sadd.s32 %s76, 1
      %p80 = scmp.eq.s32.totalorder %s21, 1
      %p81 = scmp.ne.s32.totalorder %s76, %s78
      %p82 = scmp.eq.s32.totalorder %s21, 0
      %p83 = por %p81, %p82
      %p84 = scmp.ne.s32.totalorder %s76, %s78
      %p85 = scmp.eq.s32.totalorder %s26, 1
      %p86 = por %p84, %p85
      %p87 = scmp.ne.s32.totalorder %s78, %s79
      %p88 = scmp.eq.s32.totalorder %s26, 0
      %p89 = por %p87, %p88
      %p90 = scmp.ne.s32.totalorder %s78, %s79
      %p91 = scmp.eq.s32.totalorder %s27, 1
      %p92 = por %p90, %p91
      %p94 = scmp.ne.s32.totalorder %s79, %s93
      %p95 = scmp.eq.s32.totalorder %s27, 0
      %p96 = por %p94, %p95
      %s98 = sadd.s32 %s97, 1
      %p101 = scmp.eq.s32.totalorder %s21, 1
      %p102 = scmp.ne.s32.totalorder %s97, %s99
      %p103 = scmp.eq.s32.totalorder %s21, 0
      %p104 = por %p102, %p103
      %p105 = scmp.ne.s32.totalorder %s97, %s99
      %p106 = scmp.eq.s32.totalorder %s26, 1
      %p107 = por %p105, %p106
      %p108 = scmp.ne.s32.totalorder %s99, %s100
      %p109 = scmp.eq.s32.totalorder %s26, 0
      %p110 = por %p108, %p109
      %p111 = scmp.ne.s32.totalorder %s99, %s100
      %p112 = scmp.eq.s32.totalorder %s27, 1
      %p113 = por %p111, %p112
      %p115 = scmp.ne.s32.totalorder %s100, %s114
      %p116 = scmp.eq.s32.totalorder %s27, 0
      %p117 = por %p115, %p116
      %s119 = sadd.s32 %s118, 1
      %p122 = scmp.eq.s32.totalorder %s21, 1
      %p123 = scmp.ne.s32.totalorder %s118, %s120
      %p124 = scmp.eq.s32.totalorder %s21, 0
      %p125 = por %p123, %p124
      %p126 = scmp.ne.s32.totalorder %s118, %s120
      %p127 = scmp.eq.s32.totalorder %s26, 1
      %p128 = por %p126, %p127
      %p129 = scmp.ne.s32.totalorder %s120, %s121
      %p130 = scmp.eq.s32.totalorder %s26, 0
      %p131 = por %p129, %p130
      %p132 = scmp.ne.s32.totalorder %s120, %s121
      %p133 = scmp.eq.s32.totalorder %s27, 1
      %p134 = por %p132, %p133
      %p136 = scmp.ne.s32.totalorder %s121, %s135
      %p137 = scmp.eq.s32.totalorder %s27, 0
      %p138 = por %p136, %p137
      %s140 = sadd.s32 %s139, 1
      %p143 = scmp.eq.s32.totalorder %s21, 1
      %p144 = scmp.ne.s32.totalorder %s139, %s141
      %p145 = scmp.eq.s32.totalorder %s21, 0
      %p146 = por %p144, %p145
      %p147 = scmp.ne.s32.totalorder %s139, %s141
      %p148 = scmp.eq.s32.totalorder %s26, 1
      %p149 = por %p147, %p148
      %p150 = scmp.ne.s32.totalorder %s141, %s142
      %p151 = scmp.eq.s32.totalorder %s26, 0
      %p152 = por %p150, %p151
      %p153 = scmp.ne.s32.totalorder %s141, %s142
      %p154 = scmp.eq.s32.totalorder %s27, 1
      %p155 = por %p153, %p154
      %p157 = scmp.ne.s32.totalorder %s142, %s156
      %p158 = scmp.eq.s32.totalorder %s27, 0
      %p159 = por %p157, %p158
      %s161 = sadd.s32 %s160, 1
      %p164 = scmp.eq.s32.totalorder %s21, 1
      %p165 = scmp.ne.s32.totalorder %s160, %s162
      %p166 = scmp.eq.s32.totalorder %s21, 0
      %p167 = por %p165, %p166
      %p168 = scmp.ne.s32.totalorder %s160, %s162
      %p169 = scmp.eq.s32.totalorder %s26, 1
      %p170 = por %p168, %p169
      %p171 = scmp.ne.s32.totalorder %s162, %s163
      %p172 = scmp.eq.s32.totalorder %s26, 0
      %p173 = por %p171, %p172
      %p174 = scmp.ne.s32.totalorder %s162, %s163
      %p175 = scmp.eq.s32.totalorder %s27, 1
      %p176 = por %p174, %p175
      %p178 = scmp.ne.s32.totalorder %s163, %s177
      %p179 = scmp.eq.s32.totalorder %s27, 0
      %p180 = por %p178, %p179
      %s182 = sadd.s32 %s181, 1
      %p185 = scmp.eq.s32.totalorder %s21, 1
      %p186 = scmp.ne.s32.totalorder %s181, %s183
      %p187 = scmp.eq.s32.totalorder %s21, 0
      %p188 = por %p186, %p187
      %p189 = scmp.ne.s32.totalorder %s181, %s183
      %p190 = scmp.eq.s32.totalorder %s26, 1
      %p191 = por %p189, %p190
      %p192 = scmp.ne.s32.totalorder %s183, %s184
      %p193 = scmp.eq.s32.totalorder %s26, 0
      %p194 = por %p192, %p193
      %p195 = scmp.ne.s32.totalorder %s183, %s184
      %p196 = scmp.eq.s32.totalorder %s27, 1
      %p197 = por %p195, %p196
      %p199 = scmp.ne.s32.totalorder %s184, %s198
      %p200 = scmp.eq.s32.totalorder %s27, 0
      %p201 = por %p199, %p200
      %s203 = sadd.s32 %s202, 1
      %p206 = scmp.eq.s32.totalorder %s21, 1
      %p207 = scmp.ne.s32.totalorder %s202, %s204
      %p208 = scmp.eq.s32.totalorder %s21, 0
      %p209 = por %p207, %p208
      %p210 = scmp.ne.s32.totalorder %s202, %s204
      %p211 = scmp.eq.s32.totalorder %s26, 1
      %p212 = por %p210, %p211
      %p213 = scmp.ne.s32.totalorder %s204, %s205
      %p214 = scmp.eq.s32.totalorder %s26, 0
      %p215 = por %p213, %p214
      %p216 = scmp.ne.s32.totalorder %s204, %s205
      %p217 = scmp.eq.s32.totalorder %s27, 1
      %p218 = por %p216, %p217
      %p220 = scmp.ne.s32.totalorder %s205, %s219
      %p221 = scmp.eq.s32.totalorder %s27, 0
      %p222 = por %p220, %p221
      %s224 = sadd.s32 %s223, 1
      %p227 = scmp.eq.s32.totalorder %s21, 1
      %p228 = scmp.ne.s32.totalorder %s223, %s225
      %p229 = scmp.eq.s32.totalorder %s21, 0
      %p230 = por %p228, %p229
      %p231 = scmp.ne.s32.totalorder %s223, %s225
      %p232 = scmp.eq.s32.totalorder %s26, 1
      %p233 = por %p231, %p232
      %p234 = scmp.ne.s32.totalorder %s225, %s226
      %p235 = scmp.eq.s32.totalorder %s26, 0
      %p236 = por %p234, %p235
      %p237 = scmp.ne.s32.totalorder %s225, %s226
      %p238 = scmp.eq.s32.totalorder %s27, 1
      %p239 = por %p237, %p238
      %p241 = scmp.ne.s32.totalorder %s226, %s240
      %p242 = scmp.eq.s32.totalorder %s27, 0
      %p243 = por %p241, %p242
      %s245 = sadd.s32 %s244, 1
      %p248 = scmp.eq.s32.totalorder %s21, 1
      %p249 = scmp.ne.s32.totalorder %s244, %s246
      %p250 = scmp.eq.s32.totalorder %s21, 0
      %p251 = por %p249, %p250
      %p252 = scmp.ne.s32.totalorder %s244, %s246
      %p253 = scmp.eq.s32.totalorder %s26, 1
      %p254 = por %p252, %p253
      %p255 = scmp.ne.s32.totalorder %s246, %s247
      %p256 = scmp.eq.s32.totalorder %s26, 0
      %p257 = por %p255, %p256
      %p258 = scmp.ne.s32.totalorder %s246, %s247
      %p259 = scmp.eq.s32.totalorder %s27, 1
      %p260 = por %p258, %p259
      %p262 = scmp.ne.s32.totalorder %s247, %s261
      %p263 = scmp.eq.s32.totalorder %s27, 0
      %p264 = por %p262, %p263
      %s266 = sadd.s32 %s265, 1
      %p269 = scmp.eq.s32.totalorder %s21, 1
      %p270 = scmp.ne.s32.totalorder %s265, %s267
      %p271 = scmp.eq.s32.totalorder %s21, 0
      %p272 = por %p270, %p271
      %p273 = scmp.ne.s32.totalorder %s265, %s267
      %p274 = scmp.eq.s32.totalorder %s26, 1
      %p275 = por %p273, %p274
      %p276 = scmp.ne.s32.totalorder %s267, %s268
      %p277 = scmp.eq.s32.totalorder %s26, 0
      %p278 = por %p276, %p277
      %p279 = scmp.ne.s32.totalorder %s267, %s268
      %p280 = scmp.eq.s32.totalorder %s27, 1
      %p281 = por %p279, %p280
      %p283 = scmp.ne.s32.totalorder %s268, %s282
      %p284 = scmp.eq.s32.totalorder %s27, 0
      %p285 = por %p283, %p284
      %s286 = ssub.s32 %s21, %s28
      %p287 = scmp.eq.s32.totalorder %s286, 0
      %s289 = sadd.s32 %s288, 1
      %s290 = scalar_select %p287, %s288, %s289
      %p293 = pneg %p287
      %p294 = scmp.eq.s32.totalorder %s21, 1
      %p295 = por %p293, %p294
      %p296 = scmp.ne.s32.totalorder %s288, %s291
      %p297 = scmp.eq.s32.totalorder %s21, 0
      %p298 = por %p296, %p297
      %p299 = scmp.ne.s32.totalorder %s288, %s291
      %p300 = scmp.eq.s32.totalorder %s26, 1
      %p301 = por %p299, %p300
      %p302 = scmp.ne.s32.totalorder %s291, %s292
      %p303 = scmp.eq.s32.totalorder %s26, 0
      %p304 = por %p302, %p303
      %p305 = scmp.ne.s32.totalorder %s291, %s292
      %p306 = scmp.eq.s32.totalorder %s27, 1
      %p307 = por %p305, %p306
      %p309 = scmp.ne.s32.totalorder %s292, %s308
      %p310 = scmp.eq.s32.totalorder %s27, 0
      %p311 = por %p309, %p310
      %p312 = scmp.le.s32.totalorder 1, %s21
      %p313 = scmp.lt.s32.totalorder %s21, 3
      %p314 = pnand %p312, %p313
      %p315 = pneg %p314
      // Predicated region
      $region9: #{tpu_custom_call.1} parent=5 // pred_check
        _
      $region10: #{tpu_custom_call.1} parent=5 // pred_check_branch
        %317 = sbr.rel (%p314) target = $region12
      $region11: #{tpu_custom_call.1} parent=5 // pred_region
        %s318 = ssub.s32 %s21, 1
        // Predicated region
        $region13: #{tpu_custom_call.1} parent=11 // pred_check
          %p319 = pneg %p68
        $region14: #{tpu_custom_call.1} parent=11 // pred_check_branch
          %321 = sbr.rel (%p319) target = $region16
        $region15: #{tpu_custom_call.1} parent=11 // pred_region
          _
        $region16: #{tpu_custom_call.1} parent=11 // pred_fallthru
          _
        // Predicated region
        $region17: #{tpu_custom_call.1} parent=11 // pred_check
          %p322 = pneg %p89
        $region18: #{tpu_custom_call.1} parent=11 // pred_check_branch
          %324 = sbr.rel (%p322) target = $region20
        $region19: #{tpu_custom_call.1} parent=11 // pred_region
          _
        $region20: #{tpu_custom_call.1} parent=11 // pred_fallthru
          _
        // Predicated region
        $region21: #{tpu_custom_call.1} parent=11 // pred_check
          %p325 = pneg %p110
        $region22: #{tpu_custom_call.1} parent=11 // pred_check_branch
          %327 = sbr.rel (%p325) target = $region24
        $region23: #{tpu_custom_call.1} parent=11 // pred_region
          _
        $region24: #{tpu_custom_call.1} parent=11 // pred_fallthru
          _
        // Predicated region
        $region25: #{tpu_custom_call.1} parent=11 // pred_check
          %p328 = pneg %p131
        $region26: #{tpu_custom_call.1} parent=11 // pred_check_branch
          %330 = sbr.rel (%p328) target = $region28
        $region27: #{tpu_custom_call.1} parent=11 // pred_region
          _
        $region28: #{tpu_custom_call.1} parent=11 // pred_fallthru
          _
        // Predicated region
        $region29: #{tpu_custom_call.1} parent=11 // pred_check
          %p331 = pneg %p152
        $region30: #{tpu_custom_call.1} parent=11 // pred_check_branch
          %333 = sbr.rel (%p331) target = $region32
        $region31: #{tpu_custom_call.1} parent=11 // pred_region
          _
        $region32: #{tpu_custom_call.1} parent=11 // pred_fallthru
          _
        // Predicated region
        $region33: #{tpu_custom_call.1} parent=11 // pred_check
          %p334 = pneg %p173
        $region34: #{tpu_custom_call.1} parent=11 // pred_check_branch
          %336 = sbr.rel (%p334) target = $region36
        $region35: #{tpu_custom_call.1} parent=11 // pred_region
          _
        $region36: #{tpu_custom_call.1} parent=11 // pred_fallthru
          _
        // Predicated region
        $region37: #{tpu_custom_call.1} parent=11 // pred_check
          %p337 = pneg %p194
        $region38: #{tpu_custom_call.1} parent=11 // pred_check_branch
          %339 = sbr.rel (%p337) target = $region40
        $region39: #{tpu_custom_call.1} parent=11 // pred_region
          _
        $region40: #{tpu_custom_call.1} parent=11 // pred_fallthru
          _
        // Predicated region
        $region41: #{tpu_custom_call.1} parent=11 // pred_check
          %p340 = pneg %p215
        $region42: #{tpu_custom_call.1} parent=11 // pred_check_branch
          %342 = sbr.rel (%p340) target = $region44
        $region43: #{tpu_custom_call.1} parent=11 // pred_region
          _
        $region44: #{tpu_custom_call.1} parent=11 // pred_fallthru
          _
        // Predicated region
        $region45: #{tpu_custom_call.1} parent=11 // pred_check
          %p343 = pneg %p236
        $region46: #{tpu_custom_call.1} parent=11 // pred_check_branch
          %345 = sbr.rel (%p343) target = $region48
        $region47: #{tpu_custom_call.1} parent=11 // pred_region
          _
        $region48: #{tpu_custom_call.1} parent=11 // pred_fallthru
          _
        // Predicated region
        $region49: #{tpu_custom_call.1} parent=11 // pred_check
          %p346 = pneg %p257
        $region50: #{tpu_custom_call.1} parent=11 // pred_check_branch
          %348 = sbr.rel (%p346) target = $region52
        $region51: #{tpu_custom_call.1} parent=11 // pred_region
          _
        $region52: #{tpu_custom_call.1} parent=11 // pred_fallthru
          _
        // Predicated region
        $region53: #{tpu_custom_call.1} parent=11 // pred_check
          %p349 = pneg %p278
        $region54: #{tpu_custom_call.1} parent=11 // pred_check_branch
          %351 = sbr.rel (%p349) target = $region56
        $region55: #{tpu_custom_call.1} parent=11 // pred_region
          _
        $region56: #{tpu_custom_call.1} parent=11 // pred_fallthru
          _
      $region12: #{tpu_custom_call.1} parent=5 // pred_fallthru
        _
      %p352 = scmp.lt.s32.totalorder %s21, 2
      // Predicated region
      $region57: #{tpu_custom_call.1} parent=5 // pred_check
        %p353 = pneg %p352
      $region58: #{tpu_custom_call.1} parent=5 // pred_check_branch
        %355 = sbr.rel (%p353) target = $region60
      $region59: #{tpu_custom_call.1} parent=5 // pred_region
        // Predicated region
        $region61: #{tpu_custom_call.1} parent=59 // pred_check
          %p356 = pneg %p41
        $region62: #{tpu_custom_call.1} parent=59 // pred_check_branch
          %358 = sbr.rel (%p356) target = $region64
        $region63: #{tpu_custom_call.1} parent=59 // pred_region
          %p359 = scmp.lt.s32.totalorder %s21, 1
          %s360 = scalar_select %p359, %s21, 1
          %s361 = smul.addr %s360, 8
          %s362 = scalar_lea.vmem %s0, %s361
        $region64: #{tpu_custom_call.1} parent=59 // pred_fallthru
          _
      $region60: #{tpu_custom_call.1} parent=5 // pred_fallthru
        _
      %p363 = scmp.le.s32.totalorder 1, %s21
      %p364 = scmp.lt.s32.totalorder %s21, 3
      %p365 = pnand %p363, %p364
      %p366 = pneg %p365
      // Predicated region
      $region65: #{tpu_custom_call.1} parent=5 // pred_check
        _
      $region66: #{tpu_custom_call.1} parent=5 // pred_check_branch
        %368 = sbr.rel (%p365) target = $region68
      $region67: #{tpu_custom_call.1} parent=5 // pred_region
        %s369 = ssub.s32 %s21, 1
        %p370 = scmp.lt.s32.totalorder %s26, 1
        %s371 = scalar_select %p370, %s26, 1
        %s372 = smul.addr %s371, 8
        %s373 = scalar_lea.vmem %s0, %s372
        %p374 = pneg %p47
        %p375 = pneg %p44
        %p376 = pneg %p68
        %p377 = pneg %p65
        %p378 = pneg %p89
        %p379 = pneg %p86
        %p380 = pneg %p110
        %p381 = pneg %p107
        %p382 = pneg %p131
        %p383 = pneg %p128
        %p384 = pneg %p152
        %p385 = pneg %p149
        %p386 = pneg %p173
        %p387 = pneg %p170
        %p388 = pneg %p194
        %p389 = pneg %p191
        %p390 = pneg %p215
        %p391 = pneg %p212
        %p392 = pneg %p236
        %p393 = pneg %p233
        %p394 = pneg %p257
        %p395 = pneg %p254
        %p396 = pneg %p278
        %p397 = pneg %p275
        %p398 = pneg %p304
        %p399 = pneg %p301
        %s400 = sand.u32 %s291, 1
        %s401 = scalar_lea.sflag [#allocation3], %s400
        %s402 = sand.u32 %s291, 1
        %s403 = smul.addr %s402, 8
        %s404 = scalar_lea.vmem [#allocation2], %s403
        %p405 = scmp.lt.s32.totalorder %s26, 1
        %s406 = scalar_select %p405, %s26, 1
        %s407 = smul.addr %s406, 8
        %s408 = scalar_lea.vmem %s0, %s407
        %v410 = vld [vmem:[%s408] sm:$0xff]
        %v411 = vld [vmem:[%s1] sm:$0x1]
        %v412 = vld [vmem:[%s2] sm:$0x1]
        %vm413 = vcmask 261120
        %v414 = vsel %vm413, %v410, 0.0
        %415 = vadd.xlane.f32.xlu0 %v414
        %v416 = vpop.xlane.xlu0 %415
        %v417 = vrcp.pop 32.0
        %v418 = vmul.f32 %v416, %v417
        %v419 = vsub.f32 %v410, %v418
        %v420 = vmul.f32 %v419, %v419
        %v421 = vsel %vm413, %v420, 0.0
        %422 = vadd.xlane.f32.xlu0 %v421
        %v423 = vpop.xlane.xlu0 %422
        %v424 = vmul.f32 %v423, %v417
        %v425 = vadd.f32 %v424, 1e-05
        %v426 = vrsqrt.pop %v425
        %v427 = vmul.f32 %v419, %v426
        %v429 = vlaneseq
        %v430 = vshrl.u32 %v429, 7
        %v431 = vsub.s32 0, %v430
        %v432 = vrot.slane %v411, %v431
        %v434 = vmul.f32 %v427, %v432
        %v436 = vlaneseq
        %v437 = vshrl.u32 %v436, 7
        %v438 = vsub.s32 0, %v437
        %v439 = vrot.slane %v412, %v438
        %v441 = vadd.f32 %v434, %v439
        %v442 = vpack.c.bf16 %v441, %v441
        %v443 = vld [vmem:[%s3] sm:$0xf]
        %v444 = vld [vmem:[%s3 + $0x4] sm:$0xf]
        %v445 = vld [vmem:[%s3 + $0x8] sm:$0xf]
        %v446 = vld [vmem:[%s3 + $0xc] sm:$0xf]
        %v451 = vunpack.c.l.b16 %v443
        %v452 = vunpack.c.l.b16 %v444
        %v453 = vunpack.c.l.b16 %v445
        %v454 = vunpack.c.l.b16 %v446
        %v455 = vpack.c.b16 %v452, %v451
        %v456 = vpack.c.b16 %v454, %v453
        %v460 = vsel %vm413, %v442, 0
        %462 = vmatprep.subr.bf16.mxu0 0
        %463 = vmatpush1.bf16.msra.mxu0 0
        %464 = vmatprep.subr.bf16.mxu0 0
        %465 = vmatpush1.bf16.msra.mxu0 0
        %466 = vmatprep.subr.bf16.mxu0 0
        %467 = vmatpush1.bf16.msra.mxu0 0
        %468 = vmatprep.subr.bf16.mxu0 0
        %469 = vmatpush1.bf16.msra.mxu0 0
        %470 = vmatprep.subr.bf16.mxu0 0
        %471 = vmatpush1.bf16.msra.mxu0 0
        %472 = vmatprep.subr.bf16.mxu0 0
        %473 = vmatpush1.bf16.msra.mxu0 0
        %474 = vmatprep.subr.bf16.mxu0 0
        %475 = vmatpush1.bf16.msra.mxu0 %v456
        %476 = vmatprep.subr.bf16.mxu0 0
        %477 = vmatpush1.bf16.msra.mxu0 %v455
        %478 = vmatprep.subr.bf16.mxu0 0
        %479 = vmatpush2.bf16.msra.mxu0 0
        %480 = vmatprep.subr.bf16.mxu0 0
        %481 = vmatpush2.bf16.msra.mxu0 0
        %482 = vmatprep.subr.bf16.mxu0 0
        %483 = vmatpush2.bf16.msra.mxu0 0
        %484 = vmatprep.subr.bf16.mxu0 0
        %485 = vmatpush2.bf16.msra.mxu0 0
        %486 = vmatprep.subr.bf16.mxu0 0
        %487 = vmatpush2.bf16.msra.mxu0 0
        %488 = vmatprep.subr.bf16.mxu0 0
        %489 = vmatpush2.bf16.msra.mxu0 0
        %490 = vmatprep.subr.bf16.mxu0 0
        %491 = vmatpush2.bf16.msra.mxu0 0
        %492 = vmatprep.subr.bf16.mxu0 0
        %493 = vmatpush2.bf16.msra.mxu0 0
        %494 = vmatprep.mubr.bf16.mxu0 0
        %495 = vmatmul.mubr.bf16.gmra.mxu0 %v460
        %v496 = vpop.f32.mrf.mxu0
        %v497 = vadd.f32 0.0, %v496
        %v498 = vpop.f32.mrf.mxu0
        %v499 = vpop.f32.mrf.mxu0
        %v500 = vpop.f32.mrf.mxu0
        %501 = vdwg.mxu0
        %v502 = vmul.f32 %v497, 0.35355338
        %v503 = vpack.c.bf16 %v502, %v502
        %v504 = vpack.c.bf16 %v497, %v497
        %506 = vrot.lane.b32.xlu0 %v503, 120
        %v507 = vpop.permute.xlu0 %506
        %508 = vrot.lane.b32.xlu0 %v503, 112
        %v509 = vpop.permute.xlu0 %508
        %510 = vrot.lane.b32.xlu0 %v503, 104
        %v511 = vpop.permute.xlu0 %510
        %513 = vrot.lane.b32.xlu0 %v504, 120
        %v514 = vpop.permute.xlu0 %513
        %515 = vrot.lane.b32.xlu0 %v504, 112
        %v516 = vpop.permute.xlu0 %515
        %517 = vrot.lane.b32.xlu0 %v504, 104
        %v518 = vpop.permute.xlu0 %517
        %519 = vrot.lane.b32.xlu0 %v504, 96
        %v520 = vpop.permute.xlu0 %519
        %vm521 = vcmask 64512
        %v523 = vsel %vm521, %v503, 0
        %v526 = vsel %vm521, %v520, 0
        %528 = vmatprep.subr.bf16.mxu0 0
        %529 = vmatpush1.bf16.xpose.msra.mxu0 0
        %530 = vmatprep.subr.bf16.mxu0 0
        %531 = vmatpush1.bf16.xpose.msra.mxu0 0
        %532 = vmatprep.subr.bf16.mxu0 0
        %533 = vmatpush1.bf16.xpose.msra.mxu0 0
        %534 = vmatprep.subr.bf16.mxu0 0
        %535 = vmatpush1.bf16.xpose.msra.mxu0 0
        %536 = vmatprep.subr.bf16.mxu0 0
        %537 = vmatpush1.bf16.xpose.msra.mxu0 0
        %538 = vmatprep.subr.bf16.mxu0 0
        %539 = vmatpush1.bf16.xpose.msra.mxu0 0
        %540 = vmatprep.subr.bf16.mxu0 0
        %541 = vmatpush1.bf16.xpose.msra.mxu0 0
        %542 = vmatprep.subr.bf16.mxu0 0
        %543 = vmatpush1.bf16.xpose.msra.mxu0 %v526
        %544 = vmatprep.subr.bf16.mxu0 0
        %545 = vmatpush2.bf16.xpose.msra.mxu0 0
        %546 = vmatprep.subr.bf16.mxu0 0
        %547 = vmatpush2.bf16.xpose.msra.mxu0 0
        %548 = vmatprep.subr.bf16.mxu0 0
        %549 = vmatpush2.bf16.xpose.msra.mxu0 0
        %550 = vmatprep.subr.bf16.mxu0 0
        %551 = vmatpush2.bf16.xpose.msra.mxu0 0
        %552 = vmatprep.subr.bf16.mxu0 0
        %553 = vmatpush2.bf16.xpose.msra.mxu0 0
        %554 = vmatprep.subr.bf16.mxu0 0
        %555 = vmatpush2.bf16.xpose.msra.mxu0 0
        %556 = vmatprep.subr.bf16.mxu0 0
        %557 = vmatpush2.bf16.xpose.msra.mxu0 0
        %558 = vmatprep.subr.bf16.mxu0 0
        %559 = vmatpush2.bf16.xpose.msra.mxu0 0
        %560 = vmatprep.mubr.bf16.mxu0 0
        %561 = vmatmul.mubr.bf16.gmra.mxu0 %v523
        %v562 = vpop.f32.mrf.mxu0
        %v563 = vadd.f32 0.0, %v562
        %v564 = vpop.f32.mrf.mxu0
        %v565 = vpop.f32.mrf.mxu0
        %v566 = vpop.f32.mrf.mxu0
        %567 = vdwg.mxu0
        %568 = vrot.lane.b32.xlu0 %v514, 96
        %v569 = vpop.permute.xlu0 %568
        %v571 = vsel %vm521, %v507, 0
        %v574 = vsel %vm521, %v569, 0
        %576 = vmatprep.subr.bf16.mxu0 0
        %577 = vmatpush1.bf16.xpose.msra.mxu0 0
        %578 = vmatprep.subr.bf16.mxu0 0
        %579 = vmatpush1.bf16.xpose.msra.mxu0 0
        %580 = vmatprep.subr.bf16.mxu0 0
        %581 = vmatpush1.bf16.xpose.msra.mxu0 0
        %582 = vmatprep.subr.bf16.mxu0 0
        %583 = vmatpush1.bf16.xpose.msra.mxu0 0
        %584 = vmatprep.subr.bf16.mxu0 0
        %585 = vmatpush1.bf16.xpose.msra.mxu0 0
        %586 = vmatprep.subr.bf16.mxu0 0
        %587 = vmatpush1.bf16.xpose.msra.mxu0 0
        %588 = vmatprep.subr.bf16.mxu0 0
        %589 = vmatpush1.bf16.xpose.msra.mxu0 0
        %590 = vmatprep.subr.bf16.mxu0 0
        %591 = vmatpush1.bf16.xpose.msra.mxu0 %v574
        %592 = vmatprep.subr.bf16.mxu0 0
        %593 = vmatpush2.bf16.xpose.msra.mxu0 0
        %594 = vmatprep.subr.bf16.mxu0 0
        %595 = vmatpush2.bf16.xpose.msra.mxu0 0
        %596 = vmatprep.subr.bf16.mxu0 0
        %597 = vmatpush2.bf16.xpose.msra.mxu0 0
        %598 = vmatprep.subr.bf16.mxu0 0
        %599 = vmatpush2.bf16.xpose.msra.mxu0 0
        %600 = vmatprep.subr.bf16.mxu0 0
        %601 = vmatpush2.bf16.xpose.msra.mxu0 0
        %602 = vmatprep.subr.bf16.mxu0 0
        %603 = vmatpush2.bf16.xpose.msra.mxu0 0
        %604 = vmatprep.subr.bf16.mxu0 0
        %605 = vmatpush2.bf16.xpose.msra.mxu0 0
        %606 = vmatprep.subr.bf16.mxu0 0
        %607 = vmatpush2.bf16.xpose.msra.mxu0 0
        %608 = vmatprep.mubr.bf16.mxu0 0
        %609 = vmatmul.mubr.bf16.gmra.mxu0 %v571
        %v610 = vpop.f32.mrf.mxu0
        %v611 = vadd.f32 0.0, %v610
        %v612 = vpop.f32.mrf.mxu0
        %v613 = vpop.f32.mrf.mxu0
        %v614 = vpop.f32.mrf.mxu0
        %615 = vdwg.mxu0
        %616 = vrot.lane.b32.xlu0 %v516, 96
        %v617 = vpop.permute.xlu0 %616
        %v619 = vsel %vm521, %v509, 0
        %v622 = vsel %vm521, %v617, 0
        %624 = vmatprep.subr.bf16.mxu0 0
        %625 = vmatpush1.bf16.xpose.msra.mxu0 0
        %626 = vmatprep.subr.bf16.mxu0 0
        %627 = vmatpush1.bf16.xpose.msra.mxu0 0
        %628 = vmatprep.subr.bf16.mxu0 0
        %629 = vmatpush1.bf16.xpose.msra.mxu0 0
        %630 = vmatprep.subr.bf16.mxu0 0
        %631 = vmatpush1.bf16.xpose.msra.mxu0 0
        %632 = vmatprep.subr.bf16.mxu0 0
        %633 = vmatpush1.bf16.xpose.msra.mxu0 0
        %634 = vmatprep.subr.bf16.mxu0 0
        %635 = vmatpush1.bf16.xpose.msra.mxu0 0
        %636 = vmatprep.subr.bf16.mxu0 0
        %637 = vmatpush1.bf16.xpose.msra.mxu0 0
        %638 = vmatprep.subr.bf16.mxu0 0
        %639 = vmatpush1.bf16.xpose.msra.mxu0 %v622
        %640 = vmatprep.subr.bf16.mxu0 0
        %641 = vmatpush2.bf16.xpose.msra.mxu0 0
        %642 = vmatprep.subr.bf16.mxu0 0
        %643 = vmatpush2.bf16.xpose.msra.mxu0 0
        %644 = vmatprep.subr.bf16.mxu0 0
        %645 = vmatpush2.bf16.xpose.msra.mxu0 0
        %646 = vmatprep.subr.bf16.mxu0 0
        %647 = vmatpush2.bf16.xpose.msra.mxu0 0
        %648 = vmatprep.subr.bf16.mxu0 0
        %649 = vmatpush2.bf16.xpose.msra.mxu0 0
        %650 = vmatprep.subr.bf16.mxu0 0
        %651 = vmatpush2.bf16.xpose.msra.mxu0 0
        %652 = vmatprep.subr.bf16.mxu0 0
        %653 = vmatpush2.bf16.xpose.msra.mxu0 0
        %654 = vmatprep.subr.bf16.mxu0 0
        %655 = vmatpush2.bf16.xpose.msra.mxu0 0
        %656 = vmatprep.mubr.bf16.mxu0 0
        %657 = vmatmul.mubr.bf16.gmra.mxu0 %v619
        %v658 = vpop.f32.mrf.mxu0
        %v659 = vadd.f32 0.0, %v658
        %v660 = vpop.f32.mrf.mxu0
        %v661 = vpop.f32.mrf.mxu0
        %v662 = vpop.f32.mrf.mxu0
        %663 = vdwg.mxu0
        %664 = vrot.lane.b32.xlu0 %v518, 96
        %v665 = vpop.permute.xlu0 %664
        %v667 = vsel %vm521, %v511, 0
        %v670 = vsel %vm521, %v665, 0
        %672 = vmatprep.subr.bf16.mxu0 0
        %673 = vmatpush1.bf16.xpose.msra.mxu0 0
        %674 = vmatprep.subr.bf16.mxu0 0
        %675 = vmatpush1.bf16.xpose.msra.mxu0 0
        %676 = vmatprep.subr.bf16.mxu0 0
        %677 = vmatpush1.bf16.xpose.msra.mxu0 0
        %678 = vmatprep.subr.bf16.mxu0 0
        %679 = vmatpush1.bf16.xpose.msra.mxu0 0
        %680 = vmatprep.subr.bf16.mxu0 0
        %681 = vmatpush1.bf16.xpose.msra.mxu0 0
        %682 = vmatprep.subr.bf16.mxu0 0
        %683 = vmatpush1.bf16.xpose.msra.mxu0 0
        %684 = vmatprep.subr.bf16.mxu0 0
        %685 = vmatpush1.bf16.xpose.msra.mxu0 0
        %686 = vmatprep.subr.bf16.mxu0 0
        %687 = vmatpush1.bf16.xpose.msra.mxu0 %v670
        %688 = vmatprep.subr.bf16.mxu0 0
        %689 = vmatpush2.bf16.xpose.msra.mxu0 0
        %690 = vmatprep.subr.bf16.mxu0 0
        %691 = vmatpush2.bf16.xpose.msra.mxu0 0
        %692 = vmatprep.subr.bf16.mxu0 0
        %693 = vmatpush2.bf16.xpose.msra.mxu0 0
        %694 = vmatprep.subr.bf16.mxu0 0
        %695 = vmatpush2.bf16.xpose.msra.mxu0 0
        %696 = vmatprep.subr.bf16.mxu0 0
        %697 = vmatpush2.bf16.xpose.msra.mxu0 0
        %698 = vmatprep.subr.bf16.mxu0 0
        %699 = vmatpush2.bf16.xpose.msra.mxu0 0
        %700 = vmatprep.subr.bf16.mxu0 0
        %701 = vmatpush2.bf16.xpose.msra.mxu0 0
        %702 = vmatprep.subr.bf16.mxu0 0
        %703 = vmatpush2.bf16.xpose.msra.mxu0 0
        %704 = vmatprep.mubr.bf16.mxu0 0
        %705 = vmatmul.mubr.bf16.gmra.mxu0 %v667
        %v706 = vpop.f32.mrf.mxu0
        %v707 = vadd.f32 0.0, %v706
        %v708 = vpop.f32.mrf.mxu0
        %v709 = vpop.f32.mrf.mxu0
        %v710 = vpop.f32.mrf.mxu0
        %711 = vdwg.mxu0
        %v712 = vlaneseq
        %v713 = vshrl.u32 %v712, 7
        %v714 = vlaneseq
        %v715 = vand.u32 %v714, 127
        %vm716 = vcmp.gt.s32.totalorder %v715, %v713
        %v717 = vsel %vm716, 1, 0
        %vm718 = vcmp.eq.s32.totalorder %v717, 1
        %v719 = vsel %vm718, -1e+30, %v563
        %v720 = vsel %vm718, -1e+30, %v611
        %v721 = vsel %vm718, -1e+30, %v659
        %v722 = vsel %vm718, -1e+30, %v707
        %v723 = vsel %vm521, %v719, -inf
        %724 = vmax.xlane.f32.xlu0 %v723
        %v725 = vpop.xlane.xlu0 %724
        %v726 = vsel %vm521, %v720, -inf
        %727 = vmax.xlane.f32.xlu0 %v726
        %v728 = vpop.xlane.xlu0 %727
        %v729 = vsel %vm521, %v721, -inf
        %730 = vmax.xlane.f32.xlu0 %v729
        %v731 = vpop.xlane.xlu0 %730
        %v732 = vsel %vm521, %v722, -inf
        %733 = vmax.xlane.f32.xlu0 %v732
        %v734 = vpop.xlane.xlu0 %733
        %v735 = vsub.f32 %v719, %v725
        %v736 = vsub.f32 %v720, %v728
        %v737 = vsub.f32 %v721, %v731
        %v738 = vsub.f32 %v722, %v734
        %v739 = vmul.f32 %v735, 1.442695
        %v740 = vpow.pop %v739
        %v741 = vmul.f32 %v736, 1.442695
        %v742 = vpow.pop %v741
        %v743 = vmul.f32 %v737, 1.442695
        %v744 = vpow.pop %v743
        %v745 = vmul.f32 %v738, 1.442695
        %v746 = vpow.pop %v745
        %v747 = vsel %vm521, %v740, 0.0
        %748 = vadd.xlane.f32.xlu0 %v747
        %v749 = vpop.xlane.xlu0 %748
        %v750 = vsel %vm521, %v742, 0.0
        %751 = vadd.xlane.f32.xlu0 %v750
        %v752 = vpop.xlane.xlu0 %751
        %v753 = vsel %vm521, %v744, 0.0
        %754 = vadd.xlane.f32.xlu0 %v753
        %v755 = vpop.xlane.xlu0 %754
        %v756 = vsel %vm521, %v746, 0.0
        %757 = vadd.xlane.f32.xlu0 %v756
        %v758 = vpop.xlane.xlu0 %757
        %v759 = vrcp.pop %v749
        %v760 = vrcp.pop %v752
        %v761 = vrcp.pop %v755
        %v762 = vrcp.pop %v758
        %v763 = vmul.f32 %v740, %v759
        %v764 = vmul.f32 %v742, %v760
        %v765 = vmul.f32 %v744, %v761
        %v766 = vmul.f32 %v746, %v762
        %v767 = vpack.c.bf16 %v763, %v763
        %v768 = vpack.c.bf16 %v764, %v764
        %v769 = vpack.c.bf16 %v765, %v765
        %v770 = vpack.c.bf16 %v766, %v766
        %771 = vrot.lane.b32.xlu0 %v504, 64
        %v772 = vpop.permute.xlu0 %771
        %v774 = vsel %vm521, %v767, 0
        %vm776 = vcmask 1043456
        %v778 = vsel %vm776, %v772, 0
        %780 = vmatprep.subr.bf16.mxu0 0
        %781 = vmatpush1.bf16.msra.mxu0 0
        %782 = vmatprep.subr.bf16.mxu0 0
        %783 = vmatpush1.bf16.msra.mxu0 0
        %784 = vmatprep.subr.bf16.mxu0 0
        %785 = vmatpush1.bf16.msra.mxu0 0
        %786 = vmatprep.subr.bf16.mxu0 0
        %787 = vmatpush1.bf16.msra.mxu0 0
        %788 = vmatprep.subr.bf16.mxu0 0
        %789 = vmatpush1.bf16.msra.mxu0 0
        %790 = vmatprep.subr.bf16.mxu0 0
        %791 = vmatpush1.bf16.msra.mxu0 0
        %792 = vmatprep.subr.bf16.mxu0 0
        %793 = vmatpush1.bf16.msra.mxu0 0
        %794 = vmatprep.subr.bf16.mxu0 0
        %795 = vmatpush1.bf16.msra.mxu0 %v778
        %796 = vmatprep.subr.bf16.mxu0 0
        %797 = vmatpush2.bf16.msra.mxu0 0
        %798 = vmatprep.subr.bf16.mxu0 0
        %799 = vmatpush2.bf16.msra.mxu0 0
        %800 = vmatprep.subr.bf16.mxu0 0
        %801 = vmatpush2.bf16.msra.mxu0 0
        %802 = vmatprep.subr.bf16.mxu0 0
        %803 = vmatpush2.bf16.msra.mxu0 0
        %804 = vmatprep.subr.bf16.mxu0 0
        %805 = vmatpush2.bf16.msra.mxu0 0
        %806 = vmatprep.subr.bf16.mxu0 0
        %807 = vmatpush2.bf16.msra.mxu0 0
        %808 = vmatprep.subr.bf16.mxu0 0
        %809 = vmatpush2.bf16.msra.mxu0 0
        %810 = vmatprep.subr.bf16.mxu0 0
        %811 = vmatpush2.bf16.msra.mxu0 0
        %812 = vmatprep.mubr.bf16.mxu0 0
        %813 = vmatmul.mubr.bf16.gmra.mxu0 %v774
        %v814 = vpop.f32.mrf.mxu0
        %v815 = vadd.f32 0.0, %v814
        %v816 = vpop.f32.mrf.mxu0
        %v817 = vpop.f32.mrf.mxu0
        %v818 = vpop.f32.mrf.mxu0
        %819 = vdwg.mxu0
        %820 = vrot.lane.b32.xlu0 %v514, 64
        %v821 = vpop.permute.xlu0 %820
        %v823 = vsel %vm521, %v768, 0
        %v826 = vsel %vm776, %v821, 0
        %828 = vmatprep.subr.bf16.mxu0 0
        %829 = vmatpush1.bf16.msra.mxu0 0
        %830 = vmatprep.subr.bf16.mxu0 0
        %831 = vmatpush1.bf16.msra.mxu0 0
        %832 = vmatprep.subr.bf16.mxu0 0
        %833 = vmatpush1.bf16.msra.mxu0 0
        %834 = vmatprep.subr.bf16.mxu0 0
        %835 = vmatpush1.bf16.msra.mxu0 0
        %836 = vmatprep.subr.bf16.mxu0 0
        %837 = vmatpush1.bf16.msra.mxu0 0
        %838 = vmatprep.subr.bf16.mxu0 0
        %839 = vmatpush1.bf16.msra.mxu0 0
        %840 = vmatprep.subr.bf16.mxu0 0
        %841 = vmatpush1.bf16.msra.mxu0 0
        %842 = vmatprep.subr.bf16.mxu0 0
        %843 = vmatpush1.bf16.msra.mxu0 %v826
        %844 = vmatprep.subr.bf16.mxu0 0
        %845 = vmatpush2.bf16.msra.mxu0 0
        %846 = vmatprep.subr.bf16.mxu0 0
        %847 = vmatpush2.bf16.msra.mxu0 0
        %848 = vmatprep.subr.bf16.mxu0 0
        %849 = vmatpush2.bf16.msra.mxu0 0
        %850 = vmatprep.subr.bf16.mxu0 0
        %851 = vmatpush2.bf16.msra.mxu0 0
        %852 = vmatprep.subr.bf16.mxu0 0
        %853 = vmatpush2.bf16.msra.mxu0 0
        %854 = vmatprep.subr.bf16.mxu0 0
        %855 = vmatpush2.bf16.msra.mxu0 0
        %856 = vmatprep.subr.bf16.mxu0 0
        %857 = vmatpush2.bf16.msra.mxu0 0
        %858 = vmatprep.subr.bf16.mxu0 0
        %859 = vmatpush2.bf16.msra.mxu0 0
        %860 = vmatprep.mubr.bf16.mxu0 0
        %861 = vmatmul.mubr.bf16.gmra.mxu0 %v823
        %v862 = vpop.f32.mrf.mxu0
        %v863 = vadd.f32 0.0, %v862
        %v864 = vpop.f32.mrf.mxu0
        %v865 = vpop.f32.mrf.mxu0
        %v866 = vpop.f32.mrf.mxu0
        %867 = vdwg.mxu0
        %868 = vrot.lane.b32.xlu0 %v516, 64
        %v869 = vpop.permute.xlu0 %868
        %v871 = vsel %vm521, %v769, 0
        %v874 = vsel %vm776, %v869, 0
        %876 = vmatprep.subr.bf16.mxu0 0
        %877 = vmatpush1.bf16.msra.mxu0 0
        %878 = vmatprep.subr.bf16.mxu0 0
        %879 = vmatpush1.bf16.msra.mxu0 0
        %880 = vmatprep.subr.bf16.mxu0 0
        %881 = vmatpush1.bf16.msra.mxu0 0
        %882 = vmatprep.subr.bf16.mxu0 0
        %883 = vmatpush1.bf16.msra.mxu0 0
        %884 = vmatprep.subr.bf16.mxu0 0
        %885 = vmatpush1.bf16.msra.mxu0 0
        %886 = vmatprep.subr.bf16.mxu0 0
        %887 = vmatpush1.bf16.msra.mxu0 0
        %888 = vmatprep.subr.bf16.mxu0 0
        %889 = vmatpush1.bf16.msra.mxu0 0
        %890 = vmatprep.subr.bf16.mxu0 0
        %891 = vmatpush1.bf16.msra.mxu0 %v874
        %892 = vmatprep.subr.bf16.mxu0 0
        %893 = vmatpush2.bf16.msra.mxu0 0
        %894 = vmatprep.subr.bf16.mxu0 0
        %895 = vmatpush2.bf16.msra.mxu0 0
        %896 = vmatprep.subr.bf16.mxu0 0
        %897 = vmatpush2.bf16.msra.mxu0 0
        %898 = vmatprep.subr.bf16.mxu0 0
        %899 = vmatpush2.bf16.msra.mxu0 0
        %900 = vmatprep.subr.bf16.mxu0 0
        %901 = vmatpush2.bf16.msra.mxu0 0
        %902 = vmatprep.subr.bf16.mxu0 0
        %903 = vmatpush2.bf16.msra.mxu0 0
        %904 = vmatprep.subr.bf16.mxu0 0
        %905 = vmatpush2.bf16.msra.mxu0 0
        %906 = vmatprep.subr.bf16.mxu0 0
        %907 = vmatpush2.bf16.msra.mxu0 0
        %908 = vmatprep.mubr.bf16.mxu0 0
        %909 = vmatmul.mubr.bf16.gmra.mxu0 %v871
        %v910 = vpop.f32.mrf.mxu0
        %v911 = vadd.f32 0.0, %v910
        %v912 = vpop.f32.mrf.mxu0
        %v913 = vpop.f32.mrf.mxu0
        %v914 = vpop.f32.mrf.mxu0
        %915 = vdwg.mxu0
        %916 = vrot.lane.b32.xlu0 %v518, 64
        %v917 = vpop.permute.xlu0 %916
        %v919 = vsel %vm521, %v770, 0
        %v922 = vsel %vm776, %v917, 0
        %924 = vmatprep.subr.bf16.mxu0 0
        %925 = vmatpush1.bf16.msra.mxu0 0
        %926 = vmatprep.subr.bf16.mxu0 0
        %927 = vmatpush1.bf16.msra.mxu0 0
        %928 = vmatprep.subr.bf16.mxu0 0
        %929 = vmatpush1.bf16.msra.mxu0 0
        %930 = vmatprep.subr.bf16.mxu0 0
        %931 = vmatpush1.bf16.msra.mxu0 0
        %932 = vmatprep.subr.bf16.mxu0 0
        %933 = vmatpush1.bf16.msra.mxu0 0
        %934 = vmatprep.subr.bf16.mxu0 0
        %935 = vmatpush1.bf16.msra.mxu0 0
        %936 = vmatprep.subr.bf16.mxu0 0
        %937 = vmatpush1.bf16.msra.mxu0 0
        %938 = vmatprep.subr.bf16.mxu0 0
        %939 = vmatpush1.bf16.msra.mxu0 %v922
        %940 = vmatprep.subr.bf16.mxu0 0
        %941 = vmatpush2.bf16.msra.mxu0 0
        %942 = vmatprep.subr.bf16.mxu0 0
        %943 = vmatpush2.bf16.msra.mxu0 0
        %944 = vmatprep.subr.bf16.mxu0 0
        %945 = vmatpush2.bf16.msra.mxu0 0
        %946 = vmatprep.subr.bf16.mxu0 0
        %947 = vmatpush2.bf16.msra.mxu0 0
        %948 = vmatprep.subr.bf16.mxu0 0
        %949 = vmatpush2.bf16.msra.mxu0 0
        %950 = vmatprep.subr.bf16.mxu0 0
        %951 = vmatpush2.bf16.msra.mxu0 0
        %952 = vmatprep.subr.bf16.mxu0 0
        %953 = vmatpush2.bf16.msra.mxu0 0
        %954 = vmatprep.subr.bf16.mxu0 0
        %955 = vmatpush2.bf16.msra.mxu0 0
        %956 = vmatprep.mubr.bf16.mxu0 0
        %957 = vmatmul.mubr.bf16.gmra.mxu0 %v919
        %v958 = vpop.f32.mrf.mxu0
        %v959 = vadd.f32 0.0, %v958
        %v960 = vpop.f32.mrf.mxu0
        %v961 = vpop.f32.mrf.mxu0
        %v962 = vpop.f32.mrf.mxu0
        %963 = vdwg.mxu0
        %965 = vrot.lane.b32.xlu0 %v863, 8
        %v966 = vpop.permute.xlu0 %965
        %969 = vrot.lane.b32.xlu0 %v911, 16
        %v970 = vpop.permute.xlu0 %969
        %973 = vrot.lane.b32.xlu0 %v959, 24
        %v974 = vpop.permute.xlu0 %973
        %v976 = vsel %vm521, %v815, %v966
        %vm977 = vcmask 130048
        %v978 = vsel %vm977, %v976, %v970
        %vm979 = vcmask 195584
        %v980 = vsel %vm979, %v978, %v974
        %v981 = vpack.c.bf16 %v980, %v980
        %v982 = vld [vmem:[%s4] sm:$0xf]
        %v983 = vld [vmem:[%s4 + $0x4] sm:$0xf]
        %v984 = vld [vmem:[%s4 + $0x8] sm:$0xf]
        %v985 = vld [vmem:[%s4 + $0xc] sm:$0xf]
        %v986 = vld [vmem:[%s5] sm:$0x1]
        %v988 = vlaneseq
        %v989 = vshrl.u32 %v988, 7
        %v990 = vsub.s32 0, %v989
        %v991 = vrot.slane %v986, %v990
        %v997 = vunpack.c.l.b16 %v982
        %v998 = vunpack.c.l.b16 %v983
        %v999 = vunpack.c.l.b16 %v984
        %v1000 = vunpack.c.l.b16 %v985
        %v1001 = vpack.c.b16 %v998, %v997
        %v1002 = vpack.c.b16 %v1000, %v999
        %v1006 = vsel %vm413, %v981, 0
        %1008 = vmatprep.subr.bf16.mxu0 0
        %1009 = vmatpush1.bf16.msra.mxu0 0
        %1010 = vmatprep.subr.bf16.mxu0 0
        %1011 = vmatpush1.bf16.msra.mxu0 0
        %1012 = vmatprep.subr.bf16.mxu0 0
        %1013 = vmatpush1.bf16.msra.mxu0 0
        %1014 = vmatprep.subr.bf16.mxu0 0
        %1015 = vmatpush1.bf16.msra.mxu0 0
        %1016 = vmatprep.subr.bf16.mxu0 0
        %1017 = vmatpush1.bf16.msra.mxu0 0
        %1018 = vmatprep.subr.bf16.mxu0 0
        %1019 = vmatpush1.bf16.msra.mxu0 0
        %1020 = vmatprep.subr.bf16.mxu0 0
        %1021 = vmatpush1.bf16.msra.mxu0 %v1002
        %1022 = vmatprep.subr.bf16.mxu0 0
        %1023 = vmatpush1.bf16.msra.mxu0 %v1001
        %1024 = vmatprep.subr.bf16.mxu0 0
        %1025 = vmatpush2.bf16.msra.mxu0 0
        %1026 = vmatprep.subr.bf16.mxu0 0
        %1027 = vmatpush2.bf16.msra.mxu0 0
        %1028 = vmatprep.subr.bf16.mxu0 0
        %1029 = vmatpush2.bf16.msra.mxu0 0
        %1030 = vmatprep.subr.bf16.mxu0 0
        %1031 = vmatpush2.bf16.msra.mxu0 0
        %1032 = vmatprep.subr.bf16.mxu0 0
        %1033 = vmatpush2.bf16.msra.mxu0 0
        %1034 = vmatprep.subr.bf16.mxu0 0
        %1035 = vmatpush2.bf16.msra.mxu0 0
        %1036 = vmatprep.subr.bf16.mxu0 0
        %1037 = vmatpush2.bf16.msra.mxu0 0
        %1038 = vmatprep.subr.bf16.mxu0 0
        %1039 = vmatpush2.bf16.msra.mxu0 0
        %1040 = vmatprep.mubr.bf16.mxu0 0
        %1041 = vmatmul.mubr.bf16.gmra.mxu0 %v1006
        %v1042 = vpop.f32.mrf.mxu0
        %v1043 = vadd.f32 %v991, %v1042
        %v1044 = vpop.f32.mrf.mxu0
        %v1045 = vpop.f32.mrf.mxu0
        %v1046 = vpop.f32.mrf.mxu0
        %1047 = vdwg.mxu0
        %v1048 = vadd.f32 %v410, %v1043
        %v1049 = vld [vmem:[%s6] sm:$0x1]
        %v1050 = vld [vmem:[%s7] sm:$0x1]
        %v1051 = vsel %vm413, %v1048, 0.0
        %1052 = vadd.xlane.f32.xlu0 %v1051
        %v1053 = vpop.xlane.xlu0 %1052
        %v1054 = vmul.f32 %v1053, %v417
        %v1055 = vsub.f32 %v1048, %v1054
        %v1056 = vmul.f32 %v1055, %v1055
        %v1057 = vsel %vm413, %v1056, 0.0
        %1058 = vadd.xlane.f32.xlu0 %v1057
        %v1059 = vpop.xlane.xlu0 %1058
        %v1060 = vmul.f32 %v1059, %v417
        %v1061 = vadd.f32 %v1060, 1e-05
        %v1062 = vrsqrt.pop %v1061
        %v1063 = vmul.f32 %v1055, %v1062
        %v1065 = vlaneseq
        %v1066 = vshrl.u32 %v1065, 7
        %v1067 = vsub.s32 0, %v1066
        %v1068 = vrot.slane %v1049, %v1067
        %v1070 = vmul.f32 %v1063, %v1068
        %v1072 = vlaneseq
        %v1073 = vshrl.u32 %v1072, 7
        %v1074 = vsub.s32 0, %v1073
        %v1075 = vrot.slane %v1050, %v1074
        %v1077 = vadd.f32 %v1070, %v1075
        %v1078 = vpack.c.bf16 %v1077, %v1077
        %v1079 = vld [vmem:[%s8] sm:$0xf]
        %v1080 = vld [vmem:[%s8 + $0x4] sm:$0xf]
        %v1081 = vld [vmem:[%s8 + $0x8] sm:$0xf]
        %v1082 = vld [vmem:[%s8 + $0xc] sm:$0xf]
        %v1083 = vld [vmem:[%s9] sm:$0x1]
        %v1085 = vlaneseq
        %v1086 = vshrl.u32 %v1085, 7
        %v1087 = vsub.s32 0, %v1086
        %v1088 = vrot.slane %v1083, %v1087
        %v1094 = vunpack.c.l.b16 %v1079
        %v1095 = vunpack.c.l.b16 %v1080
        %v1096 = vunpack.c.l.b16 %v1081
        %v1097 = vunpack.c.l.b16 %v1082
        %v1098 = vpack.c.b16 %v1095, %v1094
        %v1099 = vpack.c.b16 %v1097, %v1096
        %v1103 = vsel %vm413, %v1078, 0
        %1105 = vmatprep.subr.bf16.mxu0 0
        %1106 = vmatpush1.bf16.msra.mxu0 0
        %1107 = vmatprep.subr.bf16.mxu0 0
        %1108 = vmatpush1.bf16.msra.mxu0 0
        %1109 = vmatprep.subr.bf16.mxu0 0
        %1110 = vmatpush1.bf16.msra.mxu0 0
        %1111 = vmatprep.subr.bf16.mxu0 0
        %1112 = vmatpush1.bf16.msra.mxu0 0
        %1113 = vmatprep.subr.bf16.mxu0 0
        %1114 = vmatpush1.bf16.msra.mxu0 0
        %1115 = vmatprep.subr.bf16.mxu0 0
        %1116 = vmatpush1.bf16.msra.mxu0 0
        %1117 = vmatprep.subr.bf16.mxu0 0
        %1118 = vmatpush1.bf16.msra.mxu0 %v1099
        %1119 = vmatprep.subr.bf16.mxu0 0
        %1120 = vmatpush1.bf16.msra.mxu0 %v1098
        %1121 = vmatprep.subr.bf16.mxu0 0
        %1122 = vmatpush2.bf16.msra.mxu0 0
        %1123 = vmatprep.subr.bf16.mxu0 0
        %1124 = vmatpush2.bf16.msra.mxu0 0
        %1125 = vmatprep.subr.bf16.mxu0 0
        %1126 = vmatpush2.bf16.msra.mxu0 0
        %1127 = vmatprep.subr.bf16.mxu0 0
        %1128 = vmatpush2.bf16.msra.mxu0 0
        %1129 = vmatprep.subr.bf16.mxu0 0
        %1130 = vmatpush2.bf16.msra.mxu0 0
        %1131 = vmatprep.subr.bf16.mxu0 0
        %1132 = vmatpush2.bf16.msra.mxu0 0
        %1133 = vmatprep.subr.bf16.mxu0 0
        %1134 = vmatpush2.bf16.msra.mxu0 0
        %1135 = vmatprep.subr.bf16.mxu0 0
        %1136 = vmatpush2.bf16.msra.mxu0 0
        %1137 = vmatprep.mubr.bf16.mxu0 0
        %1138 = vmatmul.mubr.bf16.gmra.mxu0 %v1103
        %v1139 = vpop.f32.mrf.mxu0
        %v1140 = vadd.f32 %v1088, %v1139
        %v1141 = vpop.f32.mrf.mxu0
        %v1142 = vpop.f32.mrf.mxu0
        %v1143 = vpop.f32.mrf.mxu0
        %1144 = vdwg.mxu0
        %v1145 = vmax.f32 %v1140, 0.0
        %v1146 = vpack.c.bf16 %v1145, %v1145
        %v1147 = vld [vmem:[%s10] sm:$0xf]
        %v1148 = vld [vmem:[%s10 + $0x4] sm:$0xf]
        %v1149 = vld [vmem:[%s10 + $0x8] sm:$0xf]
        %v1150 = vld [vmem:[%s10 + $0xc] sm:$0xf]
        %v1151 = vld [vmem:[%s10 + $0x10] sm:$0xf]
        %v1152 = vld [vmem:[%s10 + $0x14] sm:$0xf]
        %v1153 = vld [vmem:[%s10 + $0x18] sm:$0xf]
        %v1154 = vld [vmem:[%s10 + $0x1c] sm:$0xf]
        %v1155 = vld [vmem:[%s10 + $0x20] sm:$0xf]
        %v1156 = vld [vmem:[%s10 + $0x24] sm:$0xf]
        %v1157 = vld [vmem:[%s10 + $0x28] sm:$0xf]
        %v1158 = vld [vmem:[%s10 + $0x2c] sm:$0xf]
        %v1159 = vld [vmem:[%s10 + $0x30] sm:$0xf]
        %v1160 = vld [vmem:[%s10 + $0x34] sm:$0xf]
        %v1161 = vld [vmem:[%s10 + $0x38] sm:$0xf]
        %v1162 = vld [vmem:[%s10 + $0x3c] sm:$0xf]
        %v1163 = vld [vmem:[%s11] sm:$0x1]
        %v1165 = vlaneseq
        %v1166 = vshrl.u32 %v1165, 7
        %v1167 = vsub.s32 0, %v1166
        %v1168 = vrot.slane %v1163, %v1167
        %v1186 = vunpack.c.l.b16 %v1147
        %v1187 = vunpack.c.l.b16 %v1148
        %v1188 = vunpack.c.l.b16 %v1149
        %v1189 = vunpack.c.l.b16 %v1150
        %v1190 = vunpack.c.l.b16 %v1151
        %v1191 = vunpack.c.l.b16 %v1152
        %v1192 = vunpack.c.l.b16 %v1153
        %v1193 = vunpack.c.l.b16 %v1154
        %v1194 = vunpack.c.l.b16 %v1155
        %v1195 = vunpack.c.l.b16 %v1156
        %v1196 = vunpack.c.l.b16 %v1157
        %v1197 = vunpack.c.l.b16 %v1158
        %v1198 = vunpack.c.l.b16 %v1159
        %v1199 = vunpack.c.l.b16 %v1160
        %v1200 = vunpack.c.l.b16 %v1161
        %v1201 = vunpack.c.l.b16 %v1162
        %v1202 = vpack.c.b16 %v1187, %v1186
        %v1203 = vpack.c.b16 %v1189, %v1188
        %v1204 = vpack.c.b16 %v1191, %v1190
        %v1205 = vpack.c.b16 %v1193, %v1192
        %v1206 = vpack.c.b16 %v1195, %v1194
        %v1207 = vpack.c.b16 %v1197, %v1196
        %v1208 = vpack.c.b16 %v1199, %v1198
        %v1209 = vpack.c.b16 %v1201, %v1200
        %1218 = vmatprep.subr.bf16.mxu0 0
        %1219 = vmatpush1.bf16.msra.mxu0 %v1209
        %1220 = vmatprep.subr.bf16.mxu0 0
        %1221 = vmatpush1.bf16.msra.mxu0 %v1208
        %1222 = vmatprep.subr.bf16.mxu0 0
        %1223 = vmatpush1.bf16.msra.mxu0 %v1207
        %1224 = vmatprep.subr.bf16.mxu0 0
        %1225 = vmatpush1.bf16.msra.mxu0 %v1206
        %1226 = vmatprep.subr.bf16.mxu0 0
        %1227 = vmatpush1.bf16.msra.mxu0 %v1205
        %1228 = vmatprep.subr.bf16.mxu0 0
        %1229 = vmatpush1.bf16.msra.mxu0 %v1204
        %1230 = vmatprep.subr.bf16.mxu0 0
        %1231 = vmatpush1.bf16.msra.mxu0 %v1203
        %1232 = vmatprep.subr.bf16.mxu0 0
        %1233 = vmatpush1.bf16.msra.mxu0 %v1202
        %1234 = vmatprep.subr.bf16.mxu0 0
        %1235 = vmatpush2.bf16.msra.mxu0 0
        %1236 = vmatprep.subr.bf16.mxu0 0
        %1237 = vmatpush2.bf16.msra.mxu0 0
        %1238 = vmatprep.subr.bf16.mxu0 0
        %1239 = vmatpush2.bf16.msra.mxu0 0
        %1240 = vmatprep.subr.bf16.mxu0 0
        %1241 = vmatpush2.bf16.msra.mxu0 0
        %1242 = vmatprep.subr.bf16.mxu0 0
        %1243 = vmatpush2.bf16.msra.mxu0 0
        %1244 = vmatprep.subr.bf16.mxu0 0
        %1245 = vmatpush2.bf16.msra.mxu0 0
        %1246 = vmatprep.subr.bf16.mxu0 0
        %1247 = vmatpush2.bf16.msra.mxu0 0
        %1248 = vmatprep.subr.bf16.mxu0 0
        %1249 = vmatpush2.bf16.msra.mxu0 0
        %1250 = vmatprep.mubr.bf16.mxu0 0
        %1251 = vmatmul.mubr.bf16.gmra.mxu0 %v1146
        %v1252 = vpop.f32.mrf.mxu0
        %v1253 = vadd.f32 %v1168, %v1252
        %v1254 = vpop.f32.mrf.mxu0
        %v1255 = vpop.f32.mrf.mxu0
        %v1256 = vpop.f32.mrf.mxu0
        %1257 = vdwg.mxu0
        %v1258 = vadd.f32 %v1048, %v1253
        %1259 = vst.msk [vmem:[%s404] sm:$0xff] %vm413, %v1258
        %s1260 = sand.u32 %s291, 1
        %s1261 = scalar_lea.sflag [#allocation3], %s1260
        %s1262 = sand.u32 %s291, 1
        %s1263 = smul.addr %s1262, 8
        %s1264 = scalar_lea.vmem [#allocation2], %s1263
        // Predicated region
        $region69: #{tpu_custom_call.1} parent=67 // pred_check
          %p1265 = pneg %p301
        $region70: #{tpu_custom_call.1} parent=67 // pred_check_branch
          %1267 = sbr.rel (%p1265) target = $region72
        $region71: #{tpu_custom_call.1} parent=67 // pred_region
          %s1269 = ssub.s32 128, 128
          %1270 = vsyncadd %s1261, %s1269
          %s1271 = smul.addr %s26, 128
          %s1272 = scalar_lea.hbm %s12, %s1271
          %s1274 = sshll.u32 %s1264, 4
          %s1275 = int_to_ptr.vmem [resolvable:$true] %s1274
          %1277 = dma.vmem_to_hbm [thread:$0]  %s1275, 128, %s1272, %s1261
        $region72: #{tpu_custom_call.1} parent=67 // pred_fallthru
          _
      $region68: #{tpu_custom_call.1} parent=5 // pred_fallthru
        _
      %p1278 = scmp.le.s32.totalorder 2, %s21
      // Predicated region
      $region73: #{tpu_custom_call.1} parent=5 // pred_check
        %p1279 = pneg %p1278
      $region74: #{tpu_custom_call.1} parent=5 // pred_check_branch
        %1281 = sbr.rel (%p1279) target = $region76
      $region75: #{tpu_custom_call.1} parent=5 // pred_region
        %s1282 = ssub.s32 %s21, 2
        // Predicated region
        $region77: #{tpu_custom_call.1} parent=75 // pred_check
          %p1283 = pneg %p307
        $region78: #{tpu_custom_call.1} parent=75 // pred_check_branch
          %1285 = sbr.rel (%p1283) target = $region80
        $region79: #{tpu_custom_call.1} parent=75 // pred_region
          %s1286 = sand.u32 %s292, 1
          %s1287 = scalar_lea.sflag [#allocation3], %s1286
          %s1288 = sand.u32 %s292, 1
          %s1289 = smul.addr %s1288, 8
          %s1290 = scalar_lea.vmem [#allocation2], %s1289
          %1291 = dma.done %s1287, 128
        $region80: #{tpu_custom_call.1} parent=75 // pred_fallthru
          _
      $region76: #{tpu_custom_call.1} parent=5 // pred_fallthru
        _
    $region6: #{tpu_custom_call.1} parent=1 // loop_footer
      %s25 = sadd.s32 1, %s21
    $region7: #{tpu_custom_call.1} parent=1 // loop_footer_branch
      %20 = sbr.rel target = $region3
    $region8: #{tpu_custom_call.1} parent=1 // loop_exit
      _
    %1292 = vsyncpa [#allocation3], 1
    %s1293 = scalar_lea.sflag [#allocation3], 1
    %1294 = vsyncpa %s1293, 1

</llo_original>
